<compile_context>
chip_gen: v7x
topology: tpu7x:2x2x1
jax: 0.10.0
libtpu: 0.0.40
codegen_flags: <defaults>
</compile_context>

<pallas_src>
import functools
import math

import jax
import jax.numpy as jnp
import numpy as np
from jax.experimental import pallas as pl
from jax.experimental.pallas import tpu as pltpu


# ---------------------------------------------------------------------------
# Fused kernel: one batch element per grid step, channels-major (C, N) tiles.
# ---------------------------------------------------------------------------
def _convdown_kernel(x_ref, wqkv_ref, w1ab_ref, w2f_ref, w3_ref, bias_ref,
                     mask_ref, out_ref, stk_ref, *, H, W):
    C = out_ref.shape[1]
    N = out_ref.shape[2]
    C2 = 2 * C
    bf16 = jnp.bfloat16
    inv_sqrt_n = 1.0 / math.sqrt(N)

    x = x_ref[0]                                      # (C, N) f32, also the shortcut

    # Packed bias/affine slab (f32, column vectors).
    bias = bias_ref[...]                              # (12C, 1)
    gamma  = bias[0:C]
    beta   = bias[C:2 * C]
    b_proj = bias[2 * C:7 * C]                        # extended QKV bias (5C, 1)
    b1f    = bias[7 * C:9 * C]                        # folded w1[:,:C]@bln + b1
    b2     = bias[9 * C:11 * C]
    b3     = bias[11 * C:12 * C]

    # ---- LayerNorm over channels (sublane axis), f32 statistics ----
    mu = jnp.mean(x, axis=0, keepdims=True)
    var = jnp.mean((x - mu) ** 2, axis=0, keepdims=True)
    xn = (x - mu) * jax.lax.rsqrt(var + 1e-5) * gamma + beta

    # ---- Fused projection: [q; k; v; W1a@v] = (5C, C) @ (C, N) (single pass) ----
    proj = jnp.dot(wqkv_ref[...], xn.astype(bf16),
                   preferred_element_type=jnp.float32) + b_proj        # (5C, N)
    q = proj[:C]
    k = proj[C:2 * C]
    v = proj[2 * C:3 * C]
    pv = proj[3 * C:5 * C]                            # == w1[:,:C] @ wln @ v (+bias)

    # ---- ESSAttn statistics (f32) ----
    q = q - jnp.mean(q, axis=0, keepdims=True)
    k = k - jnp.mean(k, axis=0, keepdims=True)
    q2 = q * q
    k2 = k * k
    q2s = jnp.sum(q2, axis=0, keepdims=True)          # per-token (1, N)
    k2s = jnp.sum(k2, axis=0, keepdims=True)          # per-token (1, N)

    # F.normalize(k2/(k2s+1e-7), dim=tokens) -> L2 over N (lane axis)
    k2n = k2 / (k2s + 1e-7)
    k2n = k2n * jax.lax.rsqrt(
        jnp.maximum(jnp.sum(k2n * k2n, axis=1, keepdims=True), 1e-24))
    # F.normalize(q2/(q2s+1e-7), dim=channels) -> L2 over C (sublane axis)
    q2n = q2 / (q2s + 1e-7)
    q2n = q2n * jax.lax.rsqrt(
        jnp.maximum(jnp.sum(q2n * q2n, axis=0, keepdims=True), 1e-24))

    # kv[c1, c2] = sum_n k2n[c1, n] * v[c2, n]
    kv = jax.lax.dot_general(k2n.astype(bf16), v.astype(bf16),
                             (((1,), (1,)), ((), ())),
                             preferred_element_type=jnp.float32)        # (C, C)

    # ---- folded y1 = W1a@v + (W1a@kv^T/sqrt(N))@q2n + W1b@x + b1f ----
    w1ab = w1ab_ref[...]                              # (2C, 2C) bf16 = [W1a | W1b]
    w1a = w1ab[:, :C]
    w1b = w1ab[:, C:]
    # tiny[o, c1] = sum_c2 W1a[o, c2] * kv[c1, c2]     (== W1a @ kv^T), negligible
    tiny = jax.lax.dot_general(w1a, kv.astype(bf16),
                               (((1,), (1,)), ((), ())),
                               preferred_element_type=jnp.float32)      # (2C, C)

    lhs = jnp.concatenate([(tiny * inv_sqrt_n).astype(bf16), w1b], axis=1)  # (2C, 2C)
    rhs = jnp.concatenate([q2n, x], axis=0).astype(bf16)                     # (2C, N)
    y1 = pv + jnp.dot(lhs, rhs, preferred_element_type=jnp.float32) + b1f    # (2C, N)
    y1 = jnp.maximum(y1, 0.2 * y1)                    # LeakyReLU(0.2)

    # ---- 3x3 conv (padding=1): XLU rolls + precomputed (1, N) masks ----
    masks = mask_ref[...]                             # (9, N) f32 tap validity
    stk_ref[pl.ds(4 * C2, C2), :] = y1.astype(bf16)   # center tap, no mask needed
    t = 0
    for dy in (-1, 0, 1):
        for dx in (-1, 0, 1):
            if not (dy == 0 and dx == 0):
                s = dy * W + dx
                rolled = pltpu.roll(y1, shift=(-s) % N, axis=1)          # (2C, N)
                stk_ref[pl.ds(t * C2, C2), :] = (rolled * masks[t:t + 1]).astype(bf16)
            t += 1

    acc = jnp.dot(w2f_ref[...], stk_ref[...],
                  preferred_element_type=jnp.float32) + b2               # (2C, N)
    y2 = jnp.maximum(acc, 0.2 * acc)

    # ---- final 1x1 conv + residual ----
    out = (jnp.dot(w3_ref[...], y2.astype(bf16),
                   preferred_element_type=jnp.float32) + b3 + x)
    out_ref[0] = out


# ---------------------------------------------------------------------------
# Parameter packing: fold wln / w1[:, :C] / biases, build tap masks.
# ---------------------------------------------------------------------------
def pack_params(p, H, W):
    f32, bf = jnp.float32, jnp.bfloat16
    C = p["wln"].shape[0]
    C2 = 2 * C
    N = H * W

    wqkv = p["wqkv"].astype(f32)                      # (3C, C)
    bqkv = p["bqkv"].astype(f32)
    wln, bln = p["wln"].astype(f32), p["bln"].astype(f32)
    w1 = p["w1"][:, :, 0, 0].astype(f32)              # (2C, 2C)
    b1 = p["b1"].astype(f32)
    w2 = p["w2"].astype(f32)                          # (2C, 2C, 3, 3)
    b2 = p["b2"].astype(f32)
    w3 = p["w3"][:, :, 0, 0].astype(f32)              # (C, 2C)
    b3 = p["b3"].astype(f32)

    w1a = w1[:, :C] @ wln                             # folded (2C, C)
    w1b = w1[:, C:]                                   # (2C, C)
    b1f = w1[:, :C] @ bln + b1                        # (2C,)

    wqkv_v = wqkv[2 * C:]
    bqkv_v = bqkv[2 * C:]
    wqkv_ext = jnp.concatenate([wqkv, w1a @ wqkv_v], axis=0)      # (5C, C)
    bqkv_ext = jnp.concatenate([bqkv, w1a @ bqkv_v], axis=0)      # (5C,)

    # 3x3 taps flattened along input channels: [co, (ky*3+kx)*C2 + ci]
    w2f = jnp.transpose(w2, (0, 2, 3, 1)).reshape(C2, 9 * C2)

    col = lambda v: v.reshape(-1, 1)
    bias_slab = jnp.concatenate(
        [col(p["gamma"].astype(f32)), col(p["beta"].astype(f32)),
         col(bqkv_ext), col(b1f), col(b2), col(b3)], axis=0)      # (12C, 1)

    # Per-tap validity masks at (9, N), computed once on host.
    yy, xx = np.divmod(np.arange(N), W)
    rows = []
    for dy in (-1, 0, 1):
        for dx in (-1, 0, 1):
            valid = ((yy + dy >= 0) & (yy + dy < H) &
                     (xx + dx >= 0) & (xx + dx < W))
            rows.append(valid.astype(np.float32))
    masks = jnp.asarray(np.stack(rows, axis=0))

    return dict(wqkv_ext=wqkv_ext.astype(bf),
                w1ab=jnp.concatenate([w1a, w1b], axis=1).astype(bf),   # (2C, 2C)
                w2f=w2f.astype(bf),
                w3=w3.astype(bf),
                bias=bias_slab.astype(f32),
                masks=masks.astype(f32))


# ---------------------------------------------------------------------------
# Wrapper
# ---------------------------------------------------------------------------
def convdown_forward(x_nchw, raw_params):
    B, C, H, W = map(int, x_nchw.shape)
    N = H * W
    C2 = 2 * C

    kp = pack_params(raw_params, H, W)
    x_cn = x_nchw.reshape(B, C, N).astype(jnp.float32)   # free reshape, no transpose

    inputs = [x_cn, kp["wqkv_ext"], kp["w1ab"], kp["w2f"], kp["w3"],
              kp["bias"], kp["masks"]]

    def rep(a):
        return pl.BlockSpec(a.shape, lambda b, _n=a.ndim: (0,) * _n)

    in_specs = ([pl.BlockSpec((1, C, N), lambda b: (b, 0, 0))]
                + [rep(a) for a in inputs[1:]])

    # VMEM budgeting: block footprint (I/O blocks, tap scratch, weights,
    # rough intermediates headroom), clamped to the chip's physical capacity.
    weight_bytes = sum(int(np.prod(a.shape)) * a.dtype.itemsize for a in inputs[1:])
    blk_bytes = 2 * C * N * 4 + 9 * C2 * N * 2 + weight_bytes + 16 * C2 * N * 4
    try:
        vmem_cap = int(pltpu.get_tpu_info().vmem_capacity_bytes)
    except Exception:
        vmem_cap = 64 * 1024 * 1024
    vmem_limit = int(min(vmem_cap * 3 // 4, max(32 * 1024 * 1024, 3 * blk_bytes)))

    flops = 96 * B * N * C * C                       # all MXU matmuls combined
    transcendentals = 2 * B * N                      # rsqrt in LN / normalize
    bytes_accessed = 2 * B * C * N * 4 + weight_bytes

    kernel = functools.partial(_convdown_kernel, H=H, W=W)
    out = pl.pallas_call(
        kernel,
        out_shape=jax.ShapeDtypeStruct((B, C, N), jnp.float32),
        grid=(B,),
        in_specs=in_specs,
        out_specs=pl.BlockSpec((1, C, N), lambda b: (b, 0, 0)),
        scratch_shapes=[pltpu.VMEM((9 * C2, N), jnp.bfloat16)],
        compiler_params=pltpu.CompilerParams(
            dimension_semantics=("parallel",),
            vmem_limit_bytes=vmem_limit),
        cost_estimate=pl.CostEstimate(flops=int(flops),
                                      transcendentals=int(transcendentals),
                                      bytes_accessed=int(bytes_accessed)),
    )(*inputs)

    return out.reshape(B, C, H, W)                   # already NCHW


# ---------------------------------------------------------------------------
# Deterministic raw parameters (shapes mirror Convdown.__init__, f32).
# ---------------------------------------------------------------------------
def init_params(key, dim):
    C, C2 = dim, 2 * dim
    ks = jax.random.split(key, 12)
    w = lambda k, s, sc=0.1: (sc * jax.random.normal(k, s)).astype(jnp.float32)
    return dict(
        wqkv=w(ks[0], (3 * C, C)), bqkv=w(ks[1], (3 * C,)),
        wln=w(ks[2], (C, C)),      bln=w(ks[3], (C,)),
        gamma=(1.0 + 0.1 * jax.random.normal(ks[4], (C,))).astype(jnp.float32),
        beta=w(ks[5], (C,)),
        w1=w(ks[6], (C2, C2, 1, 1)), b1=w(ks[7], (C2,)),
        w2=w(ks[8], (C2, C2, 3, 3)), b2=w(ks[9], (C2,)),
        w3=w(ks[10], (C, C2, 1, 1)), b3=w(ks[11], (C,)),
    )


# ---------------------------------------------------------------------------
# Pure-JAX f32 reference (same semantics as the PyTorch forward, eval dropout)
# ---------------------------------------------------------------------------
def reference_forward(x, p):
    f32 = jnp.float32
    B, C, H, W = x.shape
    N = H * W
    x = x.astype(f32)

    xe = x.reshape(B, C, N).transpose(0, 2, 1)                          # (B, N, C)
    mu = jnp.mean(xe, -1, keepdims=True)
    var = jnp.mean((xe - mu) ** 2, -1, keepdims=True)
    xn = (xe - mu) / jnp.sqrt(var + 1e-5) * p["gamma"] + p["beta"]

    qkv = xn @ p["wqkv"].astype(f32).T + p["bqkv"].astype(f32)
    q, k, v = qkv[..., :C], qkv[..., C:2 * C], qkv[..., 2 * C:]
    q = q - jnp.mean(q, -1, keepdims=True)
    k = k - jnp.mean(k, -1, keepdims=True)
    q2, k2 = q * q, k * k
    q2s = jnp.sum(q2, -1, keepdims=True)
    k2s = jnp.sum(k2, -1, keepdims=True)
    k2n = k2 / (k2s + 1e-7)
    k2n = k2n / jnp.maximum(jnp.sqrt(jnp.sum(k2n * k2n, -2, keepdims=True)), 1e-12)
    q2n = q2 / (q2s + 1e-7)
    q2n = q2n / jnp.maximum(jnp.sqrt(jnp.sum(q2n * q2n, -1, keepdims=True)), 1e-12)
    kv = jnp.einsum('bnc,bnd->bcd', k2n, v)
    t2 = jnp.einsum('bnc,bcd->bnd', q2n, kv) / math.sqrt(N)
    attn = v + t2
    a_out = attn @ p["wln"].astype(f32).T + p["bln"].astype(f32)
    a_img = a_out.transpose(0, 2, 1).reshape(B, C, H, W)

    def conv(z, w_, b_, pad):
        y = jax.lax.conv_general_dilated(
            z, w_.astype(f32), (1, 1), [(pad, pad), (pad, pad)],
            dimension_numbers=('NCHW', 'OIHW', 'NCHW'))
        return y + b_.astype(f32)[None, :, None, None]

    cat = jnp.concatenate([a_img, x], axis=1)                           # (B, 2C, H, W)
    y = conv(cat, p["w1"], p["b1"], 0)
    y = jnp.where(y > 0, y, 0.2 * y)
    y = conv(y, p["w2"], p["b2"], 1)
    y = jnp.where(y > 0, y, 0.2 * y)
    y = conv(y, p["w3"], p["b3"], 0)
    return y + x


if __name__ == "__main__":
    key = jax.random.PRNGKey(0)
    kx, kp = jax.random.split(key)
    B, dim, H, W = 2, 8, 16, 16
    x = jax.random.normal(kx, (B, dim, H, W), dtype=jnp.float32)
    params = init_params(kp, dim)

    out = jax.block_until_ready(convdown_forward(x, params))
    assert out.shape == (B, dim, H, W)

    ref = reference_forward(x, params)
    np.testing.assert_allclose(np.asarray(out), np.asarray(ref), rtol=2e-2, atol=2e-2)
    print("KERNEL_OK")
</pallas_src>

<mosaic_0001>
module attributes {stable_mosaic.version = 11 : i64} {
  func.func @_convdown_kernel(%arg0: i32, %arg1: memref<1x8x256xf32, #tpu.memory_space<vmem>>, %arg2: memref<40x8xbf16, #tpu.memory_space<vmem>>, %arg3: memref<16x16xbf16, #tpu.memory_space<vmem>>, %arg4: memref<16x144xbf16, #tpu.memory_space<vmem>>, %arg5: memref<8x16xbf16, #tpu.memory_space<vmem>>, %arg6: memref<96x1xf32, #tpu.memory_space<vmem>>, %arg7: memref<9x256xf32, #tpu.memory_space<vmem>>, %arg8: memref<1x8x256xf32, #tpu.memory_space<vmem>>, %arg9: memref<144x256xbf16, #tpu.memory_space<vmem>>) attributes {dimension_semantics = [#tpu.dimension_semantics<parallel>], iteration_bounds = array<i64: 2>, scalar_prefetch = 0 : i64, scratch_operands = 1 : i64, tpu.core_type = #tpu.core_type<tc>, window_params = [{transform_indices = @transform_0, window_bounds = array<i64: 1, 8, 256>}, {pipeline_mode = #tpu.pipeline_mode<synchronous>, transform_indices = @transform_1, window_bounds = array<i64: 40, 8>}, {pipeline_mode = #tpu.pipeline_mode<synchronous>, transform_indices = @transform_2, window_bounds = array<i64: 16, 16>}, {pipeline_mode = #tpu.pipeline_mode<synchronous>, transform_indices = @transform_3, window_bounds = array<i64: 16, 144>}, {pipeline_mode = #tpu.pipeline_mode<synchronous>, transform_indices = @transform_4, window_bounds = array<i64: 8, 16>}, {pipeline_mode = #tpu.pipeline_mode<synchronous>, transform_indices = @transform_5, window_bounds = array<i64: 96, 1>}, {pipeline_mode = #tpu.pipeline_mode<synchronous>, transform_indices = @transform_6, window_bounds = array<i64: 9, 256>}, {transform_indices = @transform_7, window_bounds = array<i64: 1, 8, 256>}]} {
    %c0 = arith.constant 0 : index
    %c0_0 = arith.constant 0 : index
    %c0_1 = arith.constant 0 : index
    %0 = vector.load %arg1[%c0, %c0_0, %c0_1] : memref<1x8x256xf32, #tpu.memory_space<vmem>>, vector<1x8x256xf32>
    %1 = vector.shape_cast %0 : vector<1x8x256xf32> to vector<8x256xf32>
    %c0_2 = arith.constant 0 : index
    %c0_3 = arith.constant 0 : index
    %2 = vector.load %arg6[%c0_2, %c0_3] : memref<96x1xf32, #tpu.memory_space<vmem>>, vector<96x1xf32>
    %3 = vector.extract_strided_slice %2 {offsets = [0, 0], sizes = [8, 1], strides = [1, 1]} : vector<96x1xf32> to vector<8x1xf32>
    %4 = vector.extract_strided_slice %2 {offsets = [8, 0], sizes = [8, 1], strides = [1, 1]} : vector<96x1xf32> to vector<8x1xf32>
    %5 = vector.extract_strided_slice %2 {offsets = [16, 0], sizes = [40, 1], strides = [1, 1]} : vector<96x1xf32> to vector<40x1xf32>
    %6 = vector.extract_strided_slice %2 {offsets = [56, 0], sizes = [16, 1], strides = [1, 1]} : vector<96x1xf32> to vector<16x1xf32>
    %7 = vector.extract_strided_slice %2 {offsets = [72, 0], sizes = [16, 1], strides = [1, 1]} : vector<96x1xf32> to vector<16x1xf32>
    %8 = vector.extract_strided_slice %2 {offsets = [88, 0], sizes = [8, 1], strides = [1, 1]} : vector<96x1xf32> to vector<8x1xf32>
    %cst = arith.constant dense<0.000000e+00> : vector<256xf32>
    %9 = vector.multi_reduction <add>, %1, %cst [0] : vector<8x256xf32> to vector<256xf32>
    %10 = vector.shape_cast %9 : vector<256xf32> to vector<1x256xf32>
    %cst_4 = arith.constant 8.000000e+00 : f32
    %11 = vector.broadcast %cst_4 : f32 to vector<1x256xf32>
    %12 = arith.divf %10, %11 : vector<1x256xf32>
    %13 = vector.broadcast %12 : vector<1x256xf32> to vector<8x256xf32>
    %14 = arith.subf %1, %13 : vector<8x256xf32>
    %15 = arith.mulf %14, %14 : vector<8x256xf32>
    %cst_5 = arith.constant dense<0.000000e+00> : vector<256xf32>
    %16 = vector.multi_reduction <add>, %15, %cst_5 [0] : vector<8x256xf32> to vector<256xf32>
    %17 = vector.shape_cast %16 : vector<256xf32> to vector<1x256xf32>
    %cst_6 = arith.constant 8.000000e+00 : f32
    %18 = vector.broadcast %cst_6 : f32 to vector<1x256xf32>
    %19 = arith.divf %17, %18 : vector<1x256xf32>
    %20 = vector.broadcast %12 : vector<1x256xf32> to vector<8x256xf32>
    %21 = arith.subf %1, %20 : vector<8x256xf32>
    %cst_7 = arith.constant 9.99999974E-6 : f32
    %22 = vector.broadcast %cst_7 : f32 to vector<1x256xf32>
    %23 = arith.addf %19, %22 : vector<1x256xf32>
    %24 = math.rsqrt %23 : vector<1x256xf32>
    %25 = vector.broadcast %24 : vector<1x256xf32> to vector<8x256xf32>
    %26 = arith.mulf %21, %25 : vector<8x256xf32>
    %27 = vector.broadcast %3 : vector<8x1xf32> to vector<8x256xf32>
    %28 = arith.mulf %26, %27 : vector<8x256xf32>
    %29 = vector.broadcast %4 : vector<8x1xf32> to vector<8x256xf32>
    %30 = arith.addf %28, %29 : vector<8x256xf32>
    %c0_8 = arith.constant 0 : index
    %c0_9 = arith.constant 0 : index
    %31 = vector.load %arg2[%c0_8, %c0_9] : memref<40x8xbf16, #tpu.memory_space<vmem>>, vector<40x8xbf16>
    %32 = arith.truncf %30 : vector<8x256xf32> to vector<8x256xbf16>
    %cst_10 = arith.constant dense<0.000000e+00> : vector<40x256xf32>
    %33 = tpu.matmul %31, %32, %cst_10 {dimension_numbers = #tpu.dot_dimension_numbers<[1], [0], [0], [1], [0, 0, 1, 1], [], []>} : vector<40x8xbf16>, vector<8x256xbf16>, vector<40x256xf32> -> vector<40x256xf32>
    %34 = vector.broadcast %5 : vector<40x1xf32> to vector<40x256xf32>
    %35 = arith.addf %33, %34 : vector<40x256xf32>
    %36 = vector.extract_strided_slice %35 {offsets = [0, 0], sizes = [8, 256], strides = [1, 1]} : vector<40x256xf32> to vector<8x256xf32>
    %37 = vector.extract_strided_slice %35 {offsets = [8, 0], sizes = [8, 256], strides = [1, 1]} : vector<40x256xf32> to vector<8x256xf32>
    %38 = vector.extract_strided_slice %35 {offsets = [16, 0], sizes = [8, 256], strides = [1, 1]} : vector<40x256xf32> to vector<8x256xf32>
    %39 = vector.extract_strided_slice %35 {offsets = [24, 0], sizes = [16, 256], strides = [1, 1]} : vector<40x256xf32> to vector<16x256xf32>
    %cst_11 = arith.constant dense<0.000000e+00> : vector<256xf32>
    %40 = vector.multi_reduction <add>, %36, %cst_11 [0] : vector<8x256xf32> to vector<256xf32>
    %41 = vector.shape_cast %40 : vector<256xf32> to vector<1x256xf32>
    %cst_12 = arith.constant 8.000000e+00 : f32
    %42 = vector.broadcast %cst_12 : f32 to vector<1x256xf32>
    %43 = arith.divf %41, %42 : vector<1x256xf32>
    %44 = vector.broadcast %43 : vector<1x256xf32> to vector<8x256xf32>
    %45 = arith.subf %36, %44 : vector<8x256xf32>
    %cst_13 = arith.constant dense<0.000000e+00> : vector<256xf32>
    %46 = vector.multi_reduction <add>, %37, %cst_13 [0] : vector<8x256xf32> to vector<256xf32>
    %47 = vector.shape_cast %46 : vector<256xf32> to vector<1x256xf32>
    %cst_14 = arith.constant 8.000000e+00 : f32
    %48 = vector.broadcast %cst_14 : f32 to vector<1x256xf32>
    %49 = arith.divf %47, %48 : vector<1x256xf32>
    %50 = vector.broadcast %49 : vector<1x256xf32> to vector<8x256xf32>
    %51 = arith.subf %37, %50 : vector<8x256xf32>
    %52 = arith.mulf %45, %45 : vector<8x256xf32>
    %53 = arith.mulf %51, %51 : vector<8x256xf32>
    %cst_15 = arith.constant dense<0.000000e+00> : vector<256xf32>
    %54 = vector.multi_reduction <add>, %52, %cst_15 [0] : vector<8x256xf32> to vector<256xf32>
    %55 = vector.shape_cast %54 : vector<256xf32> to vector<1x256xf32>
    %cst_16 = arith.constant dense<0.000000e+00> : vector<256xf32>
    %56 = vector.multi_reduction <add>, %53, %cst_16 [0] : vector<8x256xf32> to vector<256xf32>
    %57 = vector.shape_cast %56 : vector<256xf32> to vector<1x256xf32>
    %cst_17 = arith.constant 1.000000e-07 : f32
    %58 = vector.broadcast %cst_17 : f32 to vector<1x256xf32>
    %59 = arith.addf %57, %58 : vector<1x256xf32>
    %60 = vector.broadcast %59 : vector<1x256xf32> to vector<8x256xf32>
    %61 = arith.divf %53, %60 : vector<8x256xf32>
    %62 = arith.mulf %61, %61 : vector<8x256xf32>
    %cst_18 = arith.constant dense<0.000000e+00> : vector<8xf32>
    %63 = vector.multi_reduction <add>, %62, %cst_18 [1] : vector<8x256xf32> to vector<8xf32>
    %64 = vector.shape_cast %63 : vector<8xf32> to vector<8x1xf32>
    %cst_19 = arith.constant 1.000000e-24 : f32
    %65 = vector.broadcast %cst_19 : f32 to vector<8x1xf32>
    %66 = arith.maximumf %64, %65 : vector<8x1xf32>
    %67 = math.rsqrt %66 : vector<8x1xf32>
    %68 = vector.broadcast %67 : vector<8x1xf32> to vector<8x256xf32>
    %69 = arith.mulf %61, %68 : vector<8x256xf32>
    %cst_20 = arith.constant 1.000000e-07 : f32
    %70 = vector.broadcast %cst_20 : f32 to vector<1x256xf32>
    %71 = arith.addf %55, %70 : vector<1x256xf32>
    %72 = vector.broadcast %71 : vector<1x256xf32> to vector<8x256xf32>
    %73 = arith.divf %52, %72 : vector<8x256xf32>
    %74 = arith.mulf %73, %73 : vector<8x256xf32>
    %cst_21 = arith.constant dense<0.000000e+00> : vector<256xf32>
    %75 = vector.multi_reduction <add>, %74, %cst_21 [0] : vector<8x256xf32> to vector<256xf32>
    %76 = vector.shape_cast %75 : vector<256xf32> to vector<1x256xf32>
    %cst_22 = arith.constant 1.000000e-24 : f32
    %77 = vector.broadcast %cst_22 : f32 to vector<1x256xf32>
    %78 = arith.maximumf %76, %77 : vector<1x256xf32>
    %79 = math.rsqrt %78 : vector<1x256xf32>
    %80 = vector.broadcast %79 : vector<1x256xf32> to vector<8x256xf32>
    %81 = arith.mulf %73, %80 : vector<8x256xf32>
    %82 = arith.truncf %69 : vector<8x256xf32> to vector<8x256xbf16>
    %83 = arith.truncf %38 : vector<8x256xf32> to vector<8x256xbf16>
    %cst_23 = arith.constant dense<0.000000e+00> : vector<8x8xf32>
    %84 = tpu.matmul %82, %83, %cst_23 {dimension_numbers = #tpu.dot_dimension_numbers<[1], [1], [0], [0], [0, 0, 1, 0], [], []>} : vector<8x256xbf16>, vector<8x256xbf16>, vector<8x8xf32> -> vector<8x8xf32>
    %c0_24 = arith.constant 0 : index
    %c0_25 = arith.constant 0 : index
    %85 = vector.load %arg3[%c0_24, %c0_25] : memref<16x16xbf16, #tpu.memory_space<vmem>>, vector<16x16xbf16>
    %86 = vector.extract_strided_slice %85 {offsets = [0, 0], sizes = [16, 8], strides = [1, 1]} : vector<16x16xbf16> to vector<16x8xbf16>
    %87 = vector.extract_strided_slice %85 {offsets = [0, 8], sizes = [16, 8], strides = [1, 1]} : vector<16x16xbf16> to vector<16x8xbf16>
    %88 = arith.truncf %84 : vector<8x8xf32> to vector<8x8xbf16>
    %cst_26 = arith.constant dense<0.000000e+00> : vector<16x8xf32>
    %89 = tpu.matmul %86, %88, %cst_26 {dimension_numbers = #tpu.dot_dimension_numbers<[1], [1], [0], [0], [0, 0, 1, 0], [], []>} : vector<16x8xbf16>, vector<8x8xbf16>, vector<16x8xf32> -> vector<16x8xf32>
    %cst_27 = arith.constant 6.250000e-02 : f32
    %90 = vector.broadcast %cst_27 : f32 to vector<16x8xf32>
    %91 = arith.mulf %89, %90 : vector<16x8xf32>
    %92 = arith.truncf %91 : vector<16x8xf32> to vector<16x8xbf16>
    %93 = tpu.concatenate %92, %87 in 1 : vector<16x8xbf16>, vector<16x8xbf16> -> vector<16x16xbf16>
    %94 = tpu.concatenate %81, %1 in 0 : vector<8x256xf32>, vector<8x256xf32> -> vector<16x256xf32>
    %95 = arith.truncf %94 : vector<16x256xf32> to vector<16x256xbf16>
    %cst_28 = arith.constant dense<0.000000e+00> : vector<16x256xf32>
    %96 = tpu.matmul %93, %95, %cst_28 {dimension_numbers = #tpu.dot_dimension_numbers<[1], [0], [0], [1], [0, 0, 1, 1], [], []>} : vector<16x16xbf16>, vector<16x256xbf16>, vector<16x256xf32> -> vector<16x256xf32>
    %97 = arith.addf %39, %96 : vector<16x256xf32>
    %98 = vector.broadcast %6 : vector<16x1xf32> to vector<16x256xf32>
    %99 = arith.addf %97, %98 : vector<16x256xf32>
    %cst_29 = arith.constant 2.000000e-01 : f32
    %100 = vector.broadcast %cst_29 : f32 to vector<16x256xf32>
    %101 = arith.mulf %100, %99 : vector<16x256xf32>
    %102 = arith.maximumf %99, %101 : vector<16x256xf32>
    %c0_30 = arith.constant 0 : index
    %c0_31 = arith.constant 0 : index
    %103 = vector.load %arg7[%c0_30, %c0_31] : memref<9x256xf32, #tpu.memory_space<vmem>>, vector<9x256xf32>
    %104 = arith.truncf %102 : vector<16x256xf32> to vector<16x256xbf16>
    %c64 = arith.constant 64 : index
    %c0_32 = arith.constant 0 : index
    %105 = vector.load %arg9[%c64, %c0_32] : memref<144x256xbf16, #tpu.memory_space<vmem>>, vector<16x256xbf16>
    tpu.vector_store %arg9[%c64, %c0_32], %104 {strides = array<i32>} : memref<144x256xbf16, #tpu.memory_space<vmem>>, vector<16x256xbf16>,
    %c17_i32 = arith.constant 17 : i32
    %106 = tpu.dynamic_rotate %102 by %c17_i32 dim 1 : vector<16x256xf32>, i32 -> vector<16x256xf32>
    %107 = vector.extract_strided_slice %103 {offsets = [0, 0], sizes = [1, 256], strides = [1, 1]} : vector<9x256xf32> to vector<1x256xf32>
    %108 = vector.broadcast %107 : vector<1x256xf32> to vector<16x256xf32>
    %109 = arith.mulf %106, %108 : vector<16x256xf32>
    %110 = arith.truncf %109 : vector<16x256xf32> to vector<16x256xbf16>
    %c0_33 = arith.constant 0 : index
    %c0_34 = arith.constant 0 : index
    %111 = vector.load %arg9[%c0_33, %c0_34] : memref<144x256xbf16, #tpu.memory_space<vmem>>, vector<16x256xbf16>
    tpu.vector_store %arg9[%c0_33, %c0_34], %110 {strides = array<i32>} : memref<144x256xbf16, #tpu.memory_space<vmem>>, vector<16x256xbf16>,
    %c16_i32 = arith.constant 16 : i32
    %112 = tpu.dynamic_rotate %102 by %c16_i32 dim 1 : vector<16x256xf32>, i32 -> vector<16x256xf32>
    %113 = vector.extract_strided_slice %103 {offsets = [1, 0], sizes = [1, 256], strides = [1, 1]} : vector<9x256xf32> to vector<1x256xf32>
    %114 = vector.broadcast %113 : vector<1x256xf32> to vector<16x256xf32>
    %115 = arith.mulf %112, %114 : vector<16x256xf32>
    %116 = arith.truncf %115 : vector<16x256xf32> to vector<16x256xbf16>
    %c16 = arith.constant 16 : index
    %c0_35 = arith.constant 0 : index
    %117 = vector.load %arg9[%c16, %c0_35] : memref<144x256xbf16, #tpu.memory_space<vmem>>, vector<16x256xbf16>
    tpu.vector_store %arg9[%c16, %c0_35], %116 {strides = array<i32>} : memref<144x256xbf16, #tpu.memory_space<vmem>>, vector<16x256xbf16>,
    %c15_i32 = arith.constant 15 : i32
    %118 = tpu.dynamic_rotate %102 by %c15_i32 dim 1 : vector<16x256xf32>, i32 -> vector<16x256xf32>
    %119 = vector.extract_strided_slice %103 {offsets = [2, 0], sizes = [1, 256], strides = [1, 1]} : vector<9x256xf32> to vector<1x256xf32>
    %120 = vector.broadcast %119 : vector<1x256xf32> to vector<16x256xf32>
    %121 = arith.mulf %118, %120 : vector<16x256xf32>
    %122 = arith.truncf %121 : vector<16x256xf32> to vector<16x256xbf16>
    %c32 = arith.constant 32 : index
    %c0_36 = arith.constant 0 : index
    %123 = vector.load %arg9[%c32, %c0_36] : memref<144x256xbf16, #tpu.memory_space<vmem>>, vector<16x256xbf16>
    tpu.vector_store %arg9[%c32, %c0_36], %122 {strides = array<i32>} : memref<144x256xbf16, #tpu.memory_space<vmem>>, vector<16x256xbf16>,
    %c1_i32 = arith.constant 1 : i32
    %124 = tpu.dynamic_rotate %102 by %c1_i32 dim 1 : vector<16x256xf32>, i32 -> vector<16x256xf32>
    %125 = vector.extract_strided_slice %103 {offsets = [3, 0], sizes = [1, 256], strides = [1, 1]} : vector<9x256xf32> to vector<1x256xf32>
    %126 = vector.broadcast %125 : vector<1x256xf32> to vector<16x256xf32>
    %127 = arith.mulf %124, %126 : vector<16x256xf32>
    %128 = arith.truncf %127 : vector<16x256xf32> to vector<16x256xbf16>
    %c48 = arith.constant 48 : index
    %c0_37 = arith.constant 0 : index
    %129 = vector.load %arg9[%c48, %c0_37] : memref<144x256xbf16, #tpu.memory_space<vmem>>, vector<16x256xbf16>
    tpu.vector_store %arg9[%c48, %c0_37], %128 {strides = array<i32>} : memref<144x256xbf16, #tpu.memory_space<vmem>>, vector<16x256xbf16>,
    %c255_i32 = arith.constant 255 : i32
    %130 = tpu.dynamic_rotate %102 by %c255_i32 dim 1 : vector<16x256xf32>, i32 -> vector<16x256xf32>
    %131 = vector.extract_strided_slice %103 {offsets = [5, 0], sizes = [1, 256], strides = [1, 1]} : vector<9x256xf32> to vector<1x256xf32>
    %132 = vector.broadcast %131 : vector<1x256xf32> to vector<16x256xf32>
    %133 = arith.mulf %130, %132 : vector<16x256xf32>
    %134 = arith.truncf %133 : vector<16x256xf32> to vector<16x256xbf16>
    %c80 = arith.constant 80 : index
    %c0_38 = arith.constant 0 : index
    %135 = vector.load %arg9[%c80, %c0_38] : memref<144x256xbf16, #tpu.memory_space<vmem>>, vector<16x256xbf16>
    tpu.vector_store %arg9[%c80, %c0_38], %134 {strides = array<i32>} : memref<144x256xbf16, #tpu.memory_space<vmem>>, vector<16x256xbf16>,
    %c241_i32 = arith.constant 241 : i32
    %136 = tpu.dynamic_rotate %102 by %c241_i32 dim 1 : vector<16x256xf32>, i32 -> vector<16x256xf32>
    %137 = vector.extract_strided_slice %103 {offsets = [6, 0], sizes = [1, 256], strides = [1, 1]} : vector<9x256xf32> to vector<1x256xf32>
    %138 = vector.broadcast %137 : vector<1x256xf32> to vector<16x256xf32>
    %139 = arith.mulf %136, %138 : vector<16x256xf32>
    %140 = arith.truncf %139 : vector<16x256xf32> to vector<16x256xbf16>
    %c96 = arith.constant 96 : index
    %c0_39 = arith.constant 0 : index
    %141 = vector.load %arg9[%c96, %c0_39] : memref<144x256xbf16, #tpu.memory_space<vmem>>, vector<16x256xbf16>
    tpu.vector_store %arg9[%c96, %c0_39], %140 {strides = array<i32>} : memref<144x256xbf16, #tpu.memory_space<vmem>>, vector<16x256xbf16>,
    %c240_i32 = arith.constant 240 : i32
    %142 = tpu.dynamic_rotate %102 by %c240_i32 dim 1 : vector<16x256xf32>, i32 -> vector<16x256xf32>
    %143 = vector.extract_strided_slice %103 {offsets = [7, 0], sizes = [1, 256], strides = [1, 1]} : vector<9x256xf32> to vector<1x256xf32>
    %144 = vector.broadcast %143 : vector<1x256xf32> to vector<16x256xf32>
    %145 = arith.mulf %142, %144 : vector<16x256xf32>
    %146 = arith.truncf %145 : vector<16x256xf32> to vector<16x256xbf16>
    %c112 = arith.constant 112 : index
    %c0_40 = arith.constant 0 : index
    %147 = vector.load %arg9[%c112, %c0_40] : memref<144x256xbf16, #tpu.memory_space<vmem>>, vector<16x256xbf16>
    tpu.vector_store %arg9[%c112, %c0_40], %146 {strides = array<i32>} : memref<144x256xbf16, #tpu.memory_space<vmem>>, vector<16x256xbf16>,
    %c239_i32 = arith.constant 239 : i32
    %148 = tpu.dynamic_rotate %102 by %c239_i32 dim 1 : vector<16x256xf32>, i32 -> vector<16x256xf32>
    %149 = vector.extract_strided_slice %103 {offsets = [8, 0], sizes = [1, 256], strides = [1, 1]} : vector<9x256xf32> to vector<1x256xf32>
    %150 = vector.broadcast %149 : vector<1x256xf32> to vector<16x256xf32>
    %151 = arith.mulf %148, %150 : vector<16x256xf32>
    %152 = arith.truncf %151 : vector<16x256xf32> to vector<16x256xbf16>
    %c128 = arith.constant 128 : index
    %c0_41 = arith.constant 0 : index
    %153 = vector.load %arg9[%c128, %c0_41] : memref<144x256xbf16, #tpu.memory_space<vmem>>, vector<16x256xbf16>
    tpu.vector_store %arg9[%c128, %c0_41], %152 {strides = array<i32>} : memref<144x256xbf16, #tpu.memory_space<vmem>>, vector<16x256xbf16>,
    %c0_42 = arith.constant 0 : index
    %c0_43 = arith.constant 0 : index
    %154 = vector.load %arg4[%c0_42, %c0_43] : memref<16x144xbf16, #tpu.memory_space<vmem>>, vector<16x144xbf16>
    %c0_44 = arith.constant 0 : index
    %c0_45 = arith.constant 0 : index
    %155 = vector.load %arg9[%c0_44, %c0_45] : memref<144x256xbf16, #tpu.memory_space<vmem>>, vector<144x256xbf16>
    %cst_46 = arith.constant dense<0.000000e+00> : vector<16x256xf32>
    %156 = tpu.matmul %154, %155, %cst_46 {dimension_numbers = #tpu.dot_dimension_numbers<[1], [0], [0], [1], [0, 0, 1, 1], [], []>} : vector<16x144xbf16>, vector<144x256xbf16>, vector<16x256xf32> -> vector<16x256xf32>
    %157 = vector.broadcast %7 : vector<16x1xf32> to vector<16x256xf32>
    %158 = arith.addf %156, %157 : vector<16x256xf32>
    %cst_47 = arith.constant 2.000000e-01 : f32
    %159 = vector.broadcast %cst_47 : f32 to vector<16x256xf32>
    %160 = arith.mulf %159, %158 : vector<16x256xf32>
    %161 = arith.maximumf %158, %160 : vector<16x256xf32>
    %c0_48 = arith.constant 0 : index
    %c0_49 = arith.constant 0 : index
    %162 = vector.load %arg5[%c0_48, %c0_49] : memref<8x16xbf16, #tpu.memory_space<vmem>>, vector<8x16xbf16>
    %163 = arith.truncf %161 : vector<16x256xf32> to vector<16x256xbf16>
    %cst_50 = arith.constant dense<0.000000e+00> : vector<8x256xf32>
    %164 = tpu.matmul %162, %163, %cst_50 {dimension_numbers = #tpu.dot_dimension_numbers<[1], [0], [0], [1], [0, 0, 1, 1], [], []>} : vector<8x16xbf16>, vector<16x256xbf16>, vector<8x256xf32> -> vector<8x256xf32>
    %165 = vector.broadcast %8 : vector<8x1xf32> to vector<8x256xf32>
    %166 = arith.addf %164, %165 : vector<8x256xf32>
    %167 = arith.addf %166, %1 : vector<8x256xf32>
    %c0_51 = arith.constant 0 : index
    %c0_52 = arith.constant 0 : index
    %c0_53 = arith.constant 0 : index
    %168 = vector.load %arg8[%c0_51, %c0_52, %c0_53] : memref<1x8x256xf32, #tpu.memory_space<vmem>>, vector<1x8x256xf32>
    %169 = vector.shape_cast %168 : vector<1x8x256xf32> to vector<8x256xf32>
    %170 = vector.shape_cast %167 : vector<8x256xf32> to vector<1x8x256xf32>
    tpu.vector_store %arg8[%c0_51, %c0_52, %c0_53], %170 {strides = array<i32>} : memref<1x8x256xf32, #tpu.memory_space<vmem>>, vector<1x8x256xf32>,
    return
  }
  func.func @transform_0(%arg0: i32) -> (i32, i32, i32) {
    %c0_i32 = arith.constant 0 : i32
    %c0_i32_0 = arith.constant 0 : i32
    %c0_i32_1 = arith.constant 0 : i32
    return %arg0, %c0_i32, %c0_i32_0 : i32, i32, i32
  }
  func.func @transform_1(%arg0: i32) -> (i32, i32) {
    %c0_i32 = arith.constant 0 : i32
    %c0_i32_0 = arith.constant 0 : i32
    %c0_i32_1 = arith.constant 0 : i32
    return %c0_i32, %c0_i32_0 : i32, i32
  }
  func.func @transform_2(%arg0: i32) -> (i32, i32) {
    %c0_i32 = arith.constant 0 : i32
    %c0_i32_0 = arith.constant 0 : i32
    %c0_i32_1 = arith.constant 0 : i32
    return %c0_i32, %c0_i32_0 : i32, i32
  }
  func.func @transform_3(%arg0: i32) -> (i32, i32) {
    %c0_i32 = arith.constant 0 : i32
    %c0_i32_0 = arith.constant 0 : i32
    %c0_i32_1 = arith.constant 0 : i32
    return %c0_i32, %c0_i32_0 : i32, i32
  }
  func.func @transform_4(%arg0: i32) -> (i32, i32) {
    %c0_i32 = arith.constant 0 : i32
    %c0_i32_0 = arith.constant 0 : i32
    %c0_i32_1 = arith.constant 0 : i32
    return %c0_i32, %c0_i32_0 : i32, i32
  }
  func.func @transform_5(%arg0: i32) -> (i32, i32) {
    %c0_i32 = arith.constant 0 : i32
    %c0_i32_0 = arith.constant 0 : i32
    %c0_i32_1 = arith.constant 0 : i32
    return %c0_i32, %c0_i32_0 : i32, i32
  }
  func.func @transform_6(%arg0: i32) -> (i32, i32) {
    %c0_i32 = arith.constant 0 : i32
    %c0_i32_0 = arith.constant 0 : i32
    %c0_i32_1 = arith.constant 0 : i32
    return %c0_i32, %c0_i32_0 : i32, i32
  }
  func.func @transform_7(%arg0: i32) -> (i32, i32, i32) {
    %c0_i32 = arith.constant 0 : i32
    %c0_i32_0 = arith.constant 0 : i32
    %c0_i32_1 = arith.constant 0 : i32
    return %arg0, %c0_i32, %c0_i32_0 : i32, i32, i32
  }
}

</mosaic_0001>

<llo_original>
// kernel: tpu_custom_call.1
$region0: #{tpu_custom_call.1}
  #allocation0 [shape = 'u32[]', space=smem, size = 0x4, offset = 0x4, fixed_abs, tag = 'smem constant byte address 0x4 - core index']
  #allocation1 [shape = 'u32[144,128]{1,0:T(1,128)}', space=vmem, size = 0x12000, scoped, tag = 'internal scratch']
  #allocation2 [shape = 'bf16[144,256]{1,0:T(16,128)(2,1)}', space=vmem, size = 0x12000, scoped, tag = 'scratch operand']
  %s0 = inlined_call_operand.vmem [shape: f32[2,8,256], index: 0, kind: input, shape index: {}]
  %s1 = inlined_call_operand.vmem [shape: bf16[40,8], index: 1, kind: input, shape index: {}]
  %s2 = inlined_call_operand.vmem [shape: bf16[16,16], index: 2, kind: input, shape index: {}]
  %s3 = inlined_call_operand.vmem [shape: bf16[16,144], index: 3, kind: input, shape index: {}]
  %s4 = inlined_call_operand.vmem [shape: bf16[8,16], index: 4, kind: input, shape index: {}]
  %s5 = inlined_call_operand.vmem [shape: f32[96,1], index: 5, kind: input, shape index: {}]
  %s6 = inlined_call_operand.vmem [shape: f32[9,256], index: 6, kind: input, shape index: {}]
  %s7 = inlined_call_operand.hbm [shape: f32[2,8,256], index: 7, kind: output, shape index: {}]
  %s8 = sld [smem:[#allocation0]]
  $region61: #{tpu_custom_call.1} parent=0
    _
  %s10 = ssub.s32 1, %s8
  %s11 = scalar_select 0, %s10, %s8
  $region1: #{tpu_custom_call.1} parent=0
    #allocation3 [shape = 'u8[16384]{0}', space=vmem, size = 0x4000, scoped, tag = 'output window, operand 0']
    #allocation4 [shape = 's32[2]{0}', space=sflag, size = 0x8, scoped, tag = 'scoped memory for tpu_custom_call.1']
    %12 = vsyncpa [#allocation4], 0
    %s13 = scalar_lea.sflag [#allocation4], 1
    %14 = vsyncpa %s13, 0
    loop: start=0, step=1, limit=4
    $region2: #{tpu_custom_call.1} parent=1 // loop_pre_header
      _
    $region3: #{tpu_custom_call.1} parent=1 // loop_header
      %s16 = sphi 0, %s20
      %p17 = scmp.ge.s32.totalorder %s16, 4
      %s26 = sphi 0, %s28
      %s29 = sphi 0, %s26
      %s30 = sphi 0, %s29
      %s46 = sphi 0, %s30
      %s50 = sphi 0, %s50
      %s52 = sphi 0, %s50
      %s53 = sphi 0, %s52
      %s67 = sphi 0, %s53
      %s71 = sphi 0, %s71
      %s73 = sphi 0, %s71
      %s74 = sphi 0, %s73
      %s88 = sphi 0, %s74
      %s92 = sphi 0, %s92
      %s94 = sphi 0, %s92
      %s95 = sphi 0, %s94
      %s109 = sphi 0, %s95
      %s113 = sphi 0, %s113
      %s115 = sphi 0, %s113
      %s116 = sphi 0, %s115
      %s130 = sphi 0, %s116
      %s134 = sphi 0, %s134
      %s136 = sphi 0, %s134
      %s137 = sphi 0, %s136
      %s151 = sphi 0, %s137
      %s155 = sphi 0, %s155
      %s157 = sphi 0, %s155
      %s158 = sphi 0, %s157
      %s172 = sphi 0, %s158
      %s178 = sphi 0, %s180
      %s181 = sphi 0, %s178
      %s182 = sphi 0, %s181
      %s198 = sphi 0, %s182
    $region4: #{tpu_custom_call.1} parent=1 // loop_header_branch
      %19 = sbr.rel (%p17) target = $region8
    $region5: #{tpu_custom_call.1} parent=1 // loop_body
      %s21 = ssub.s32 %s16, 1
      %s22 = ssub.s32 %s16, 2
      %s23 = sadd.s32 %s16, 1
      %s24 = ssub.s32 %s16, %s23
      %p25 = scmp.eq.s32.totalorder %s24, 0
      %s27 = sadd.s32 %s26, 1
      %s28 = scalar_select %p25, %s26, %s27
      %p31 = pneg %p25
      %p32 = scmp.eq.s32.totalorder %s16, 1
      %p33 = por %p31, %p32
      %p34 = scmp.ne.s32.totalorder %s26, %s29
      %p35 = scmp.eq.s32.totalorder %s16, 0
      %p36 = por %p34, %p35
      %p37 = scmp.ne.s32.totalorder %s26, %s29
      %p38 = scmp.eq.s32.totalorder %s21, 1
      %p39 = por %p37, %p38
      %p40 = scmp.ne.s32.totalorder %s29, %s30
      %p41 = scmp.eq.s32.totalorder %s21, 0
      %p42 = por %p40, %p41
      %p43 = scmp.ne.s32.totalorder %s29, %s30
      %p44 = scmp.eq.s32.totalorder %s22, 1
      %p45 = por %p43, %p44
      %p47 = scmp.ne.s32.totalorder %s30, %s46
      %p48 = scmp.eq.s32.totalorder %s22, 0
      %p49 = por %p47, %p48
      %s51 = sadd.s32 %s50, 1
      %p54 = scmp.eq.s32.totalorder %s16, 1
      %p55 = scmp.ne.s32.totalorder %s50, %s52
      %p56 = scmp.eq.s32.totalorder %s16, 0
      %p57 = por %p55, %p56
      %p58 = scmp.ne.s32.totalorder %s50, %s52
      %p59 = scmp.eq.s32.totalorder %s21, 1
      %p60 = por %p58, %p59
      %p61 = scmp.ne.s32.totalorder %s52, %s53
      %p62 = scmp.eq.s32.totalorder %s21, 0
      %p63 = por %p61, %p62
      %p64 = scmp.ne.s32.totalorder %s52, %s53
      %p65 = scmp.eq.s32.totalorder %s22, 1
      %p66 = por %p64, %p65
      %p68 = scmp.ne.s32.totalorder %s53, %s67
      %p69 = scmp.eq.s32.totalorder %s22, 0
      %p70 = por %p68, %p69
      %s72 = sadd.s32 %s71, 1
      %p75 = scmp.eq.s32.totalorder %s16, 1
      %p76 = scmp.ne.s32.totalorder %s71, %s73
      %p77 = scmp.eq.s32.totalorder %s16, 0
      %p78 = por %p76, %p77
      %p79 = scmp.ne.s32.totalorder %s71, %s73
      %p80 = scmp.eq.s32.totalorder %s21, 1
      %p81 = por %p79, %p80
      %p82 = scmp.ne.s32.totalorder %s73, %s74
      %p83 = scmp.eq.s32.totalorder %s21, 0
      %p84 = por %p82, %p83
      %p85 = scmp.ne.s32.totalorder %s73, %s74
      %p86 = scmp.eq.s32.totalorder %s22, 1
      %p87 = por %p85, %p86
      %p89 = scmp.ne.s32.totalorder %s74, %s88
      %p90 = scmp.eq.s32.totalorder %s22, 0
      %p91 = por %p89, %p90
      %s93 = sadd.s32 %s92, 1
      %p96 = scmp.eq.s32.totalorder %s16, 1
      %p97 = scmp.ne.s32.totalorder %s92, %s94
      %p98 = scmp.eq.s32.totalorder %s16, 0
      %p99 = por %p97, %p98
      %p100 = scmp.ne.s32.totalorder %s92, %s94
      %p101 = scmp.eq.s32.totalorder %s21, 1
      %p102 = por %p100, %p101
      %p103 = scmp.ne.s32.totalorder %s94, %s95
      %p104 = scmp.eq.s32.totalorder %s21, 0
      %p105 = por %p103, %p104
      %p106 = scmp.ne.s32.totalorder %s94, %s95
      %p107 = scmp.eq.s32.totalorder %s22, 1
      %p108 = por %p106, %p107
      %p110 = scmp.ne.s32.totalorder %s95, %s109
      %p111 = scmp.eq.s32.totalorder %s22, 0
      %p112 = por %p110, %p111
      %s114 = sadd.s32 %s113, 1
      %p117 = scmp.eq.s32.totalorder %s16, 1
      %p118 = scmp.ne.s32.totalorder %s113, %s115
      %p119 = scmp.eq.s32.totalorder %s16, 0
      %p120 = por %p118, %p119
      %p121 = scmp.ne.s32.totalorder %s113, %s115
      %p122 = scmp.eq.s32.totalorder %s21, 1
      %p123 = por %p121, %p122
      %p124 = scmp.ne.s32.totalorder %s115, %s116
      %p125 = scmp.eq.s32.totalorder %s21, 0
      %p126 = por %p124, %p125
      %p127 = scmp.ne.s32.totalorder %s115, %s116
      %p128 = scmp.eq.s32.totalorder %s22, 1
      %p129 = por %p127, %p128
      %p131 = scmp.ne.s32.totalorder %s116, %s130
      %p132 = scmp.eq.s32.totalorder %s22, 0
      %p133 = por %p131, %p132
      %s135 = sadd.s32 %s134, 1
      %p138 = scmp.eq.s32.totalorder %s16, 1
      %p139 = scmp.ne.s32.totalorder %s134, %s136
      %p140 = scmp.eq.s32.totalorder %s16, 0
      %p141 = por %p139, %p140
      %p142 = scmp.ne.s32.totalorder %s134, %s136
      %p143 = scmp.eq.s32.totalorder %s21, 1
      %p144 = por %p142, %p143
      %p145 = scmp.ne.s32.totalorder %s136, %s137
      %p146 = scmp.eq.s32.totalorder %s21, 0
      %p147 = por %p145, %p146
      %p148 = scmp.ne.s32.totalorder %s136, %s137
      %p149 = scmp.eq.s32.totalorder %s22, 1
      %p150 = por %p148, %p149
      %p152 = scmp.ne.s32.totalorder %s137, %s151
      %p153 = scmp.eq.s32.totalorder %s22, 0
      %p154 = por %p152, %p153
      %s156 = sadd.s32 %s155, 1
      %p159 = scmp.eq.s32.totalorder %s16, 1
      %p160 = scmp.ne.s32.totalorder %s155, %s157
      %p161 = scmp.eq.s32.totalorder %s16, 0
      %p162 = por %p160, %p161
      %p163 = scmp.ne.s32.totalorder %s155, %s157
      %p164 = scmp.eq.s32.totalorder %s21, 1
      %p165 = por %p163, %p164
      %p166 = scmp.ne.s32.totalorder %s157, %s158
      %p167 = scmp.eq.s32.totalorder %s21, 0
      %p168 = por %p166, %p167
      %p169 = scmp.ne.s32.totalorder %s157, %s158
      %p170 = scmp.eq.s32.totalorder %s22, 1
      %p171 = por %p169, %p170
      %p173 = scmp.ne.s32.totalorder %s158, %s172
      %p174 = scmp.eq.s32.totalorder %s22, 0
      %p175 = por %p173, %p174
      %s176 = ssub.s32 %s16, %s23
      %p177 = scmp.eq.s32.totalorder %s176, 0
      %s179 = sadd.s32 %s178, 1
      %s180 = scalar_select %p177, %s178, %s179
      %p183 = pneg %p177
      %p184 = scmp.eq.s32.totalorder %s16, 1
      %p185 = por %p183, %p184
      %p186 = scmp.ne.s32.totalorder %s178, %s181
      %p187 = scmp.eq.s32.totalorder %s16, 0
      %p188 = por %p186, %p187
      %p189 = scmp.ne.s32.totalorder %s178, %s181
      %p190 = scmp.eq.s32.totalorder %s21, 1
      %p191 = por %p189, %p190
      %p192 = scmp.ne.s32.totalorder %s181, %s182
      %p193 = scmp.eq.s32.totalorder %s21, 0
      %p194 = por %p192, %p193
      %p195 = scmp.ne.s32.totalorder %s181, %s182
      %p196 = scmp.eq.s32.totalorder %s22, 1
      %p197 = por %p195, %p196
      %p199 = scmp.ne.s32.totalorder %s182, %s198
      %p200 = scmp.eq.s32.totalorder %s22, 0
      %p201 = por %p199, %p200
      %p202 = scmp.le.s32.totalorder 1, %s16
      %p203 = scmp.lt.s32.totalorder %s16, 3
      %p204 = pnand %p202, %p203
      %p205 = pneg %p204
      // Predicated region
      $region9: #{tpu_custom_call.1} parent=5 // pred_check
        _
      $region10: #{tpu_custom_call.1} parent=5 // pred_check_branch
        %207 = sbr.rel (%p204) target = $region12
      $region11: #{tpu_custom_call.1} parent=5 // pred_region
        %s208 = ssub.s32 %s16, 1
        // Predicated region
        $region13: #{tpu_custom_call.1} parent=11 // pred_check
          %p209 = pneg %p63
        $region14: #{tpu_custom_call.1} parent=11 // pred_check_branch
          %211 = sbr.rel (%p209) target = $region16
        $region15: #{tpu_custom_call.1} parent=11 // pred_region
          _
        $region16: #{tpu_custom_call.1} parent=11 // pred_fallthru
          _
        // Predicated region
        $region17: #{tpu_custom_call.1} parent=11 // pred_check
          %p212 = pneg %p84
        $region18: #{tpu_custom_call.1} parent=11 // pred_check_branch
          %214 = sbr.rel (%p212) target = $region20
        $region19: #{tpu_custom_call.1} parent=11 // pred_region
          _
        $region20: #{tpu_custom_call.1} parent=11 // pred_fallthru
          _
        // Predicated region
        $region21: #{tpu_custom_call.1} parent=11 // pred_check
          %p215 = pneg %p105
        $region22: #{tpu_custom_call.1} parent=11 // pred_check_branch
          %217 = sbr.rel (%p215) target = $region24
        $region23: #{tpu_custom_call.1} parent=11 // pred_region
          _
        $region24: #{tpu_custom_call.1} parent=11 // pred_fallthru
          _
        // Predicated region
        $region25: #{tpu_custom_call.1} parent=11 // pred_check
          %p218 = pneg %p126
        $region26: #{tpu_custom_call.1} parent=11 // pred_check_branch
          %220 = sbr.rel (%p218) target = $region28
        $region27: #{tpu_custom_call.1} parent=11 // pred_region
          _
        $region28: #{tpu_custom_call.1} parent=11 // pred_fallthru
          _
        // Predicated region
        $region29: #{tpu_custom_call.1} parent=11 // pred_check
          %p221 = pneg %p147
        $region30: #{tpu_custom_call.1} parent=11 // pred_check_branch
          %223 = sbr.rel (%p221) target = $region32
        $region31: #{tpu_custom_call.1} parent=11 // pred_region
          _
        $region32: #{tpu_custom_call.1} parent=11 // pred_fallthru
          _
        // Predicated region
        $region33: #{tpu_custom_call.1} parent=11 // pred_check
          %p224 = pneg %p168
        $region34: #{tpu_custom_call.1} parent=11 // pred_check_branch
          %226 = sbr.rel (%p224) target = $region36
        $region35: #{tpu_custom_call.1} parent=11 // pred_region
          _
        $region36: #{tpu_custom_call.1} parent=11 // pred_fallthru
          _
      $region12: #{tpu_custom_call.1} parent=5 // pred_fallthru
        _
      %p227 = scmp.lt.s32.totalorder %s16, 2
      // Predicated region
      $region37: #{tpu_custom_call.1} parent=5 // pred_check
        %p228 = pneg %p227
      $region38: #{tpu_custom_call.1} parent=5 // pred_check_branch
        %230 = sbr.rel (%p228) target = $region40
      $region39: #{tpu_custom_call.1} parent=5 // pred_region
        // Predicated region
        $region41: #{tpu_custom_call.1} parent=39 // pred_check
          %p231 = pneg %p36
        $region42: #{tpu_custom_call.1} parent=39 // pred_check_branch
          %233 = sbr.rel (%p231) target = $region44
        $region43: #{tpu_custom_call.1} parent=39 // pred_region
          %p234 = scmp.lt.s32.totalorder %s16, 1
          %s235 = scalar_select %p234, %s16, 1
          %s236 = smul.addr %s235, 2
          %s237 = smul.addr %s236, 8
          %s238 = scalar_lea.vmem %s0, %s237
        $region44: #{tpu_custom_call.1} parent=39 // pred_fallthru
          _
      $region40: #{tpu_custom_call.1} parent=5 // pred_fallthru
        _
      %p239 = scmp.le.s32.totalorder 1, %s16
      %p240 = scmp.lt.s32.totalorder %s16, 3
      %p241 = pnand %p239, %p240
      %p242 = pneg %p241
      // Predicated region
      $region45: #{tpu_custom_call.1} parent=5 // pred_check
        _
      $region46: #{tpu_custom_call.1} parent=5 // pred_check_branch
        %244 = sbr.rel (%p241) target = $region48
      $region47: #{tpu_custom_call.1} parent=5 // pred_region
        %s245 = ssub.s32 %s16, 1
        %p246 = scmp.lt.s32.totalorder %s21, 1
        %s247 = scalar_select %p246, %s21, 1
        %s248 = smul.addr %s247, 2
        %s249 = smul.addr %s248, 8
        %s250 = scalar_lea.vmem %s0, %s249
        %p251 = pneg %p42
        %p252 = pneg %p39
        %p253 = pneg %p63
        %p254 = pneg %p60
        %p255 = pneg %p84
        %p256 = pneg %p81
        %p257 = pneg %p105
        %p258 = pneg %p102
        %p259 = pneg %p126
        %p260 = pneg %p123
        %p261 = pneg %p147
        %p262 = pneg %p144
        %p263 = pneg %p168
        %p264 = pneg %p165
        %p265 = pneg %p194
        %p266 = pneg %p191
        %s267 = sand.u32 %s181, 1
        %s268 = scalar_lea.sflag [#allocation4], %s267
        %s269 = sand.u32 %s181, 1
        %s270 = smul.addr %s269, 16
        %s271 = scalar_lea.vmem [#allocation3], %s270
        %p272 = scmp.lt.s32.totalorder %s21, 1
        %s273 = scalar_select %p272, %s21, 1
        %s274 = smul.addr %s273, 2
        %s275 = smul.addr %s274, 8
        %s276 = scalar_lea.vmem %s0, %s275
        %v278 = vld [vmem:[%s276] sm:$0xff]
        %v279 = vld [vmem:[%s276 + $0x8] sm:$0xff]
        %v280 = vld [vmem:[%s5] sm:$0xff]
        %v281 = vld [vmem:[%s5 + $0x8] sm:$0xff]
        %v282 = vld [vmem:[%s5 + $0x10] sm:$0xff]
        %v283 = vld [vmem:[%s5 + $0x18] sm:$0xff]
        %v284 = vld [vmem:[%s5 + $0x20] sm:$0xff]
        %v285 = vld [vmem:[%s5 + $0x28] sm:$0xff]
        %v286 = vld [vmem:[%s5 + $0x30] sm:$0xff]
        %v287 = vld [vmem:[%s5 + $0x38] sm:$0xff]
        %v288 = vld [vmem:[%s5 + $0x40] sm:$0xff]
        %v289 = vld [vmem:[%s5 + $0x48] sm:$0xff]
        %v290 = vld [vmem:[%s5 + $0x50] sm:$0xff]
        %v291 = vld [vmem:[%s5 + $0x58] sm:$0xff]
        %v292 = vrot.slane %v278, 4
        %v293 = vadd.f32 %v278, %v292
        %v294 = vrot.slane %v293, 2
        %v295 = vadd.f32 %v293, %v294
        %v296 = vrot.slane %v295, 1
        %v297 = vadd.f32 %v295, %v296
        %v298 = vrot.slane %v279, 4
        %v299 = vadd.f32 %v279, %v298
        %v300 = vrot.slane %v299, 2
        %v301 = vadd.f32 %v299, %v300
        %v302 = vrot.slane %v301, 1
        %v303 = vadd.f32 %v301, %v302
        %v304 = vrcp.pop 8.0
        %v305 = vmul.f32 %v297, %v304
        %v306 = vmul.f32 %v303, %v304
        %v307 = vsub.f32 %v278, %v305
        %v308 = vsub.f32 %v279, %v306
        %v309 = vmul.f32 %v307, %v307
        %v310 = vmul.f32 %v308, %v308
        %v311 = vrot.slane %v309, 4
        %v312 = vadd.f32 %v309, %v311
        %v313 = vrot.slane %v312, 2
        %v314 = vadd.f32 %v312, %v313
        %v315 = vrot.slane %v314, 1
        %v316 = vadd.f32 %v314, %v315
        %v317 = vrot.slane %v310, 4
        %v318 = vadd.f32 %v310, %v317
        %v319 = vrot.slane %v318, 2
        %v320 = vadd.f32 %v318, %v319
        %v321 = vrot.slane %v320, 1
        %v322 = vadd.f32 %v320, %v321
        %v323 = vmul.f32 %v316, %v304
        %v324 = vmul.f32 %v322, %v304
        %v325 = vadd.f32 %v323, 1e-05
        %v326 = vadd.f32 %v324, 1e-05
        %v327 = vrsqrt.pop %v325
        %v328 = vrsqrt.pop %v326
        %v329 = vmul.f32 %v307, %v327
        %v330 = vmul.f32 %v308, %v328
        %332 = vset.pattern.permute.xlu0 0
        %333 = vperm.xlu0 %332, %v280
        %v334 = vpop.permute.xlu0 %333
        %v336 = vmul.f32 %v329, %v334
        %v337 = vmul.f32 %v330, %v334
        %339 = vset.pattern.permute.xlu0 0
        %340 = vperm.xlu0 %339, %v281
        %v341 = vpop.permute.xlu0 %340
        %v343 = vadd.f32 %v336, %v341
        %v344 = vadd.f32 %v337, %v341
        %v345 = vld [vmem:[%s1] sm:$0xf]
        %v346 = vld [vmem:[%s1 + $0x4] sm:$0xf]
        %v347 = vld [vmem:[%s1 + $0x8] sm:$0xf]
        %v348 = vld [vmem:[%s1 + $0xc] sm:$0xf]
        %v349 = vld [vmem:[%s1 + $0x10] sm:$0xf]
        %v350 = vpack.c.bf16 %v343, %v343
        %v351 = vpack.c.bf16 %v344, %v344
        %353 = vset.pattern.permute.xlu0 0
        %354 = vperm.xlu0 %353, %v282
        %v355 = vpop.permute.xlu0 %354
        %358 = vset.pattern.permute.xlu0 0
        %359 = vperm.xlu0 %358, %v283
        %v360 = vpop.permute.xlu0 %359
        %363 = vset.pattern.permute.xlu0 0
        %364 = vperm.xlu0 %363, %v284
        %v365 = vpop.permute.xlu0 %364
        %368 = vset.pattern.permute.xlu0 0
        %369 = vperm.xlu0 %368, %v285
        %v370 = vpop.permute.xlu0 %369
        %373 = vset.pattern.permute.xlu0 0
        %374 = vperm.xlu0 %373, %v286
        %v375 = vpop.permute.xlu0 %374
        %v382 = vunpack.c.l.b16 %v345
        %v383 = vunpack.c.l.b16 %v346
        %v384 = vunpack.c.l.b16 %v347
        %v385 = vunpack.c.l.b16 %v348
        %v386 = vunpack.c.l.b16 %v349
        %v387 = vpack.c.b16 %v383, %v382
        %v388 = vpack.c.b16 %v385, %v384
        %v389 = vpack.c.b16 %v386, %v386
        %vm390 = vcmask 64512
        %v392 = vsel %vm390, %v387, 0
        %v395 = vsel %vm390, %v388, 0
        %v398 = vsel %vm390, %v389, 0
        %vm400 = vcmask 1043456
        %v402 = vsel %vm400, %v350, 0
        %v405 = vsel %vm400, %v351, 0
        %407 = vmatprep.subr.bf16.mxu0 %v405
        %408 = vmatpush1.bf16.msra.mxu0 %v402
        %409 = vmatprep.subr.bf16.mxu0 0
        %410 = vmatpush1.bf16.msra.mxu0 0
        %411 = vmatprep.subr.bf16.mxu0 0
        %412 = vmatpush1.bf16.msra.mxu0 0
        %413 = vmatprep.subr.bf16.mxu0 0
        %414 = vmatpush1.bf16.msra.mxu0 0
        %415 = vmatprep.subr.bf16.mxu0 0
        %416 = vmatpush1.bf16.msra.mxu0 0
        %417 = vmatprep.subr.bf16.mxu0 0
        %418 = vmatpush1.bf16.msra.mxu0 0
        %419 = vmatprep.subr.bf16.mxu0 0
        %420 = vmatpush1.bf16.msra.mxu0 0
        %421 = vmatprep.subr.bf16.mxu0 0
        %422 = vmatpush1.bf16.msra.mxu0 0
        %423 = vmatprep.subr.bf16.mxu0 0
        %424 = vmatpush1.bf16.msra.mxu0 0
        %425 = vmatprep.subr.bf16.mxu0 0
        %426 = vmatpush1.bf16.msra.mxu0 0
        %427 = vmatprep.subr.bf16.mxu0 0
        %428 = vmatpush1.bf16.msra.mxu0 0
        %429 = vmatprep.subr.bf16.mxu0 0
        %430 = vmatpush1.bf16.msra.mxu0 0
        %431 = vmatprep.subr.bf16.mxu0 0
        %432 = vmatpush1.bf16.msra.mxu0 0
        %433 = vmatprep.subr.bf16.mxu0 0
        %434 = vmatpush1.bf16.msra.mxu0 0
        %435 = vmatprep.subr.bf16.mxu0 0
        %436 = vmatpush1.bf16.msra.mxu0 0
        %437 = vmatprep.subr.bf16.mxu0 0
        %438 = vmatpush1.bf16.msra.mxu0 0
        %439 = vmatprep.mubr.bf16.mxu0 0
        %440 = vmatmul.mubr.bf16.gmra.mrb[0].mxu0 %v392
        %v441 = vpop.f32.mrb[0].mxu0
        %v442 = vadd.f32 %v355, %v441
        %v443 = vpop.f32.mrb[0].mxu0
        %v444 = vadd.f32 %v355, %v443
        %v445 = vpop.f32.mrb[0].mxu0
        %v446 = vadd.f32 %v360, %v445
        %v447 = vpop.f32.mrb[0].mxu0
        %v448 = vadd.f32 %v360, %v447
        %449 = vmatprep.mubr.bf16.mxu0 0
        %450 = vmatmul.mubr.bf16.gmra.mrb[0].mxu0 %v395
        %v451 = vpop.f32.mrb[0].mxu0
        %v452 = vadd.f32 %v365, %v451
        %v453 = vpop.f32.mrb[0].mxu0
        %v454 = vadd.f32 %v365, %v453
        %v455 = vpop.f32.mrb[0].mxu0
        %v456 = vadd.f32 %v370, %v455
        %v457 = vpop.f32.mrb[0].mxu0
        %v458 = vadd.f32 %v370, %v457
        %459 = vmatprep.mubr.bf16.mxu0 0
        %460 = vmatmul.mubr.bf16.gmra.mrb[0].mxu0 %v398
        %v461 = vpop.f32.mrb[0].mxu0
        %v462 = vadd.f32 %v375, %v461
        %v463 = vpop.f32.mrb[0].mxu0
        %v464 = vadd.f32 %v375, %v463
        %v465 = vpop.f32.mrb[0].mxu0
        %v466 = vpop.f32.mrb[0].mxu0
        %467 = vdwg.mxu0
        %v468 = vrot.slane %v442, 4
        %v469 = vadd.f32 %v442, %v468
        %v470 = vrot.slane %v469, 2
        %v471 = vadd.f32 %v469, %v470
        %v472 = vrot.slane %v471, 1
        %v473 = vadd.f32 %v471, %v472
        %v474 = vrot.slane %v444, 4
        %v475 = vadd.f32 %v444, %v474
        %v476 = vrot.slane %v475, 2
        %v477 = vadd.f32 %v475, %v476
        %v478 = vrot.slane %v477, 1
        %v479 = vadd.f32 %v477, %v478
        %v480 = vmul.f32 %v473, %v304
        %v481 = vmul.f32 %v479, %v304
        %v482 = vsub.f32 %v442, %v480
        %v483 = vsub.f32 %v444, %v481
        %v484 = vrot.slane %v446, 4
        %v485 = vadd.f32 %v446, %v484
        %v486 = vrot.slane %v485, 2
        %v487 = vadd.f32 %v485, %v486
        %v488 = vrot.slane %v487, 1
        %v489 = vadd.f32 %v487, %v488
        %v490 = vrot.slane %v448, 4
        %v491 = vadd.f32 %v448, %v490
        %v492 = vrot.slane %v491, 2
        %v493 = vadd.f32 %v491, %v492
        %v494 = vrot.slane %v493, 1
        %v495 = vadd.f32 %v493, %v494
        %v496 = vmul.f32 %v489, %v304
        %v497 = vmul.f32 %v495, %v304
        %v498 = vsub.f32 %v446, %v496
        %v499 = vsub.f32 %v448, %v497
        %v500 = vmul.f32 %v482, %v482
        %v501 = vmul.f32 %v483, %v483
        %v502 = vmul.f32 %v498, %v498
        %v503 = vmul.f32 %v499, %v499
        %v504 = vrot.slane %v500, 4
        %v505 = vadd.f32 %v500, %v504
        %v506 = vrot.slane %v505, 2
        %v507 = vadd.f32 %v505, %v506
        %v508 = vrot.slane %v507, 1
        %v509 = vadd.f32 %v507, %v508
        %v510 = vrot.slane %v501, 4
        %v511 = vadd.f32 %v501, %v510
        %v512 = vrot.slane %v511, 2
        %v513 = vadd.f32 %v511, %v512
        %v514 = vrot.slane %v513, 1
        %v515 = vadd.f32 %v513, %v514
        %v516 = vrot.slane %v502, 4
        %v517 = vadd.f32 %v502, %v516
        %v518 = vrot.slane %v517, 2
        %v519 = vadd.f32 %v517, %v518
        %v520 = vrot.slane %v519, 1
        %v521 = vadd.f32 %v519, %v520
        %v522 = vrot.slane %v503, 4
        %v523 = vadd.f32 %v503, %v522
        %v524 = vrot.slane %v523, 2
        %v525 = vadd.f32 %v523, %v524
        %v526 = vrot.slane %v525, 1
        %v527 = vadd.f32 %v525, %v526
        %v528 = vadd.f32 %v521, 1e-07
        %v529 = vadd.f32 %v527, 1e-07
        %v530 = vrcp.pop %v528
        %v531 = vmul.f32 %v502, %v530
        %v532 = vrcp.pop %v529
        %v533 = vmul.f32 %v503, %v532
        %v534 = vmul.f32 %v531, %v531
        %v535 = vmul.f32 %v533, %v533
        %v536 = vadd.f32 %v534, %v535
        %537 = vadd.xlane.f32.xlu0 %v536
        %v538 = vpop.xlane.xlu0 %537
        %v539 = vmax.f32 %v538, 1e-24
        %v540 = vrsqrt.pop %v539
        %v541 = vmul.f32 %v531, %v540
        %v542 = vmul.f32 %v533, %v540
        %v543 = vadd.f32 %v509, 1e-07
        %v544 = vadd.f32 %v515, 1e-07
        %v545 = vrcp.pop %v543
        %v546 = vmul.f32 %v500, %v545
        %v547 = vrcp.pop %v544
        %v548 = vmul.f32 %v501, %v547
        %v549 = vmul.f32 %v546, %v546
        %v550 = vmul.f32 %v548, %v548
        %v551 = vrot.slane %v549, 4
        %v552 = vadd.f32 %v549, %v551
        %v553 = vrot.slane %v552, 2
        %v554 = vadd.f32 %v552, %v553
        %v555 = vrot.slane %v554, 1
        %v556 = vadd.f32 %v554, %v555
        %v557 = vrot.slane %v550, 4
        %v558 = vadd.f32 %v550, %v557
        %v559 = vrot.slane %v558, 2
        %v560 = vadd.f32 %v558, %v559
        %v561 = vrot.slane %v560, 1
        %v562 = vadd.f32 %v560, %v561
        %v563 = vmax.f32 %v556, 1e-24
        %v564 = vmax.f32 %v562, 1e-24
        %v565 = vrsqrt.pop %v563
        %v566 = vrsqrt.pop %v564
        %v567 = vmul.f32 %v546, %v565
        %v568 = vmul.f32 %v548, %v566
        %v569 = vpack.c.bf16 %v541, %v541
        %v570 = vpack.c.bf16 %v542, %v542
        %v571 = vpack.c.bf16 %v452, %v452
        %v572 = vpack.c.bf16 %v454, %v454
        %573 = vmatprep.subr.bf16.mxu0 %v572
        %574 = vmatpush1.bf16.xpose.msra.mxu0 %v571
        %575 = vmatprep.subr.bf16.mxu0 0
        %576 = vmatpush1.bf16.xpose.msra.mxu0 0
        %577 = vmatprep.subr.bf16.mxu0 0
        %578 = vmatpush1.bf16.xpose.msra.mxu0 0
        %579 = vmatprep.subr.bf16.mxu0 0
        %580 = vmatpush1.bf16.xpose.msra.mxu0 0
        %581 = vmatprep.subr.bf16.mxu0 0
        %582 = vmatpush1.bf16.xpose.msra.mxu0 0
        %583 = vmatprep.subr.bf16.mxu0 0
        %584 = vmatpush1.bf16.xpose.msra.mxu0 0
        %585 = vmatprep.subr.bf16.mxu0 0
        %586 = vmatpush1.bf16.xpose.msra.mxu0 0
        %587 = vmatprep.subr.bf16.mxu0 0
        %588 = vmatpush1.bf16.xpose.msra.mxu0 0
        %589 = vmatprep.subr.bf16.mxu0 0
        %590 = vmatpush1.bf16.xpose.msra.mxu0 0
        %591 = vmatprep.subr.bf16.mxu0 0
        %592 = vmatpush1.bf16.xpose.msra.mxu0 0
        %593 = vmatprep.subr.bf16.mxu0 0
        %594 = vmatpush1.bf16.xpose.msra.mxu0 0
        %595 = vmatprep.subr.bf16.mxu0 0
        %596 = vmatpush1.bf16.xpose.msra.mxu0 0
        %597 = vmatprep.subr.bf16.mxu0 0
        %598 = vmatpush1.bf16.xpose.msra.mxu0 0
        %599 = vmatprep.subr.bf16.mxu0 0
        %600 = vmatpush1.bf16.xpose.msra.mxu0 0
        %601 = vmatprep.subr.bf16.mxu0 0
        %602 = vmatpush1.bf16.xpose.msra.mxu0 0
        %603 = vmatprep.subr.bf16.mxu0 0
        %604 = vmatpush1.bf16.xpose.msra.mxu0 0
        %605 = vmatprep.mubr.bf16.mxu0 %v570
        %606 = vmatmul.mubr.bf16.gmra.mrb[0].mxu0 %v569
        %v607 = vpop.f32.mrb[0].mxu0
        %v608 = vadd.f32 0.0, %v607
        %v609 = vpop.f32.mrb[0].mxu0
        %v610 = vpop.f32.mrb[0].mxu0
        %v611 = vpop.f32.mrb[0].mxu0
        %612 = vdwg.mxu0
        %v613 = vld [vmem:[%s2] sm:$0xf]
        %v614 = vld [vmem:[%s2 + $0x4] sm:$0xf]
        %v615 = vpack.c.bf16 %v608, %v608
        %v618 = vunpack.c.l.b16 %v613
        %v619 = vunpack.c.l.b16 %v614
        %v620 = vpack.c.b16 %v619, %v618
        %v622 = vsel %vm390, %v620, 0
        %v625 = vsel %vm390, %v615, 0
        %627 = vmatprep.subr.bf16.mxu0 0
        %628 = vmatpush1.bf16.xpose.msra.mxu0 %v625
        %629 = vmatprep.subr.bf16.mxu0 0
        %630 = vmatpush1.bf16.xpose.msra.mxu0 0
        %631 = vmatprep.subr.bf16.mxu0 0
        %632 = vmatpush1.bf16.xpose.msra.mxu0 0
        %633 = vmatprep.subr.bf16.mxu0 0
        %634 = vmatpush1.bf16.xpose.msra.mxu0 0
        %635 = vmatprep.subr.bf16.mxu0 0
        %636 = vmatpush1.bf16.xpose.msra.mxu0 0
        %637 = vmatprep.subr.bf16.mxu0 0
        %638 = vmatpush1.bf16.xpose.msra.mxu0 0
        %639 = vmatprep.subr.bf16.mxu0 0
        %640 = vmatpush1.bf16.xpose.msra.mxu0 0
        %641 = vmatprep.subr.bf16.mxu0 0
        %642 = vmatpush1.bf16.xpose.msra.mxu0 0
        %643 = vmatprep.subr.bf16.mxu0 0
        %644 = vmatpush1.bf16.xpose.msra.mxu0 0
        %645 = vmatprep.subr.bf16.mxu0 0
        %646 = vmatpush1.bf16.xpose.msra.mxu0 0
        %647 = vmatprep.subr.bf16.mxu0 0
        %648 = vmatpush1.bf16.xpose.msra.mxu0 0
        %649 = vmatprep.subr.bf16.mxu0 0
        %650 = vmatpush1.bf16.xpose.msra.mxu0 0
        %651 = vmatprep.subr.bf16.mxu0 0
        %652 = vmatpush1.bf16.xpose.msra.mxu0 0
        %653 = vmatprep.subr.bf16.mxu0 0
        %654 = vmatpush1.bf16.xpose.msra.mxu0 0
        %655 = vmatprep.subr.bf16.mxu0 0
        %656 = vmatpush1.bf16.xpose.msra.mxu0 0
        %657 = vmatprep.subr.bf16.mxu0 0
        %658 = vmatpush1.bf16.xpose.msra.mxu0 0
        %659 = vmatprep.mubr.bf16.mxu0 0
        %660 = vmatmul.mubr.bf16.gmra.mrb[0].mxu0 %v622
        %v661 = vpop.f32.mrb[0].mxu0
        %v662 = vadd.f32 0.0, %v661
        %v663 = vpop.f32.mrb[0].mxu0
        %v664 = vpop.f32.mrb[0].mxu0
        %v665 = vadd.f32 0.0, %v664
        %v666 = vpop.f32.mrb[0].mxu0
        %667 = vdwg.mxu0
        %v668 = vmul.f32 %v662, 0.0625
        %v669 = vmul.f32 %v665, 0.0625
        %v670 = vpack.c.bf16 %v669, %v668
        %v672 = vsel %vm390, %v670, %v620
        %v673 = vpack.c.bf16 %v278, %v567
        %v674 = vpack.c.bf16 %v279, %v568
        %vm675 = vcmask 130048
        %v676 = vsel %vm675, %v672, 0
        %678 = vmatprep.subr.bf16.mxu0 %v674
        %679 = vmatpush1.bf16.msra.mxu0 %v673
        %680 = vmatprep.subr.bf16.mxu0 0
        %681 = vmatpush1.bf16.msra.mxu0 0
        %682 = vmatprep.subr.bf16.mxu0 0
        %683 = vmatpush1.bf16.msra.mxu0 0
        %684 = vmatprep.subr.bf16.mxu0 0
        %685 = vmatpush1.bf16.msra.mxu0 0
        %686 = vmatprep.subr.bf16.mxu0 0
        %687 = vmatpush1.bf16.msra.mxu0 0
        %688 = vmatprep.subr.bf16.mxu0 0
        %689 = vmatpush1.bf16.msra.mxu0 0
        %690 = vmatprep.subr.bf16.mxu0 0
        %691 = vmatpush1.bf16.msra.mxu0 0
        %692 = vmatprep.subr.bf16.mxu0 0
        %693 = vmatpush1.bf16.msra.mxu0 0
        %694 = vmatprep.subr.bf16.mxu0 0
        %695 = vmatpush1.bf16.msra.mxu0 0
        %696 = vmatprep.subr.bf16.mxu0 0
        %697 = vmatpush1.bf16.msra.mxu0 0
        %698 = vmatprep.subr.bf16.mxu0 0
        %699 = vmatpush1.bf16.msra.mxu0 0
        %700 = vmatprep.subr.bf16.mxu0 0
        %701 = vmatpush1.bf16.msra.mxu0 0
        %702 = vmatprep.subr.bf16.mxu0 0
        %703 = vmatpush1.bf16.msra.mxu0 0
        %704 = vmatprep.subr.bf16.mxu0 0
        %705 = vmatpush1.bf16.msra.mxu0 0
        %706 = vmatprep.subr.bf16.mxu0 0
        %707 = vmatpush1.bf16.msra.mxu0 0
        %708 = vmatprep.subr.bf16.mxu0 0
        %709 = vmatpush1.bf16.msra.mxu0 0
        %710 = vmatprep.mubr.bf16.mxu0 0
        %711 = vmatmul.mubr.bf16.gmra.mrb[0].mxu0 %v676
        %v712 = vpop.f32.mrb[0].mxu0
        %v713 = vadd.f32 0.0, %v712
        %v714 = vpop.f32.mrb[0].mxu0
        %v715 = vadd.f32 0.0, %v714
        %v716 = vpop.f32.mrb[0].mxu0
        %v717 = vadd.f32 0.0, %v716
        %v718 = vpop.f32.mrb[0].mxu0
        %v719 = vadd.f32 0.0, %v718
        %720 = vdwg.mxu0
        %v721 = vadd.f32 %v456, %v713
        %v722 = vadd.f32 %v458, %v715
        %v723 = vadd.f32 %v462, %v717
        %v724 = vadd.f32 %v464, %v719
        %726 = vset.pattern.permute.xlu0 0
        %727 = vperm.xlu0 %726, %v287
        %v728 = vpop.permute.xlu0 %727
        %731 = vset.pattern.permute.xlu0 0
        %732 = vperm.xlu0 %731, %v288
        %v733 = vpop.permute.xlu0 %732
        %v735 = vadd.f32 %v721, %v728
        %v736 = vadd.f32 %v722, %v728
        %v737 = vadd.f32 %v723, %v733
        %v738 = vadd.f32 %v724, %v733
        %v739 = vmul.f32 %v735, 0.2
        %v740 = vmul.f32 %v736, 0.2
        %v741 = vmul.f32 %v737, 0.2
        %v742 = vmul.f32 %v738, 0.2
        %v743 = vmax.f32 %v735, %v739
        %v744 = vmax.f32 %v736, %v740
        %v745 = vmax.f32 %v737, %v741
        %v746 = vmax.f32 %v738, %v742
        %v747 = vld [vmem:[%s6] sm:$0xff]
        %v748 = vld [vmem:[%s6 + $0x8] sm:$0xff]
        %v749 = vld [vmem:[%s6 + $0x10] sm:$0x1]
        %v750 = vld [vmem:[%s6 + $0x18] sm:$0x1]
        %v751 = vpack.c.bf16 %v745, %v743
        %v752 = vpack.c.bf16 %v746, %v744
        %753 = vst [vmem:[#allocation2 + $0x40] sm:$0xff] %v751
        %754 = vst [vmem:[#allocation2 + $0x48] sm:$0xff] %v752
        %755 = vrot.lane.b32.xlu0 %v743, 17
        %v756 = vpop.permute.xlu0 %755
        %757 = vrot.lane.b32.xlu0 %v745, 17
        %v758 = vpop.permute.xlu0 %757
        %759 = vrot.lane.b32.xlu0 %v744, 17
        %v760 = vpop.permute.xlu0 %759
        %761 = vrot.lane.b32.xlu0 %v746, 17
        %v762 = vpop.permute.xlu0 %761
        %v763 = vlaneseq
        %v764 = vand.u32 %v763, 127
        %vm765 = vcmp.lt.s32.totalorder %v764, 17
        %v766 = vsel %vm765, %v756, %v760
        %v767 = vsel %vm765, %v758, %v762
        %v768 = vsel %vm765, %v760, %v756
        %v769 = vsel %vm765, %v762, %v758
        %v770 = vlaneseq
        %v771 = vshrl.u32 %v770, 7
        %v772 = vsub.s32 0, %v771
        %v773 = vrot.slane %v747, %v772
        %v774 = vlaneseq
        %v775 = vshrl.u32 %v774, 7
        %v776 = vsub.s32 0, %v775
        %v777 = vrot.slane %v748, %v776
        %v778 = vmul.f32 %v768, %v773
        %v779 = vmul.f32 %v766, %v777
        %v780 = vmul.f32 %v769, %v773
        %v781 = vmul.f32 %v767, %v777
        %v782 = vpack.c.bf16 %v780, %v778
        %v783 = vpack.c.bf16 %v781, %v779
        %784 = vst [vmem:[#allocation2] sm:$0xff] %v782
        %785 = vst [vmem:[#allocation2 + $0x8] sm:$0xff] %v783
        %786 = vrot.lane.b32.xlu0 %v743, 16
        %v787 = vpop.permute.xlu0 %786
        %788 = vrot.lane.b32.xlu0 %v745, 16
        %v789 = vpop.permute.xlu0 %788
        %790 = vrot.lane.b32.xlu0 %v744, 16
        %v791 = vpop.permute.xlu0 %790
        %792 = vrot.lane.b32.xlu0 %v746, 16
        %v793 = vpop.permute.xlu0 %792
        %vm794 = vcmp.lt.s32.totalorder %v764, 16
        %v795 = vsel %vm794, %v787, %v791
        %v796 = vsel %vm794, %v789, %v793
        %v797 = vsel %vm794, %v791, %v787
        %v798 = vsel %vm794, %v793, %v789
        %v799 = vlaneseq
        %v800 = vshrl.u32 %v799, 7
        %v801 = vsub.s32 1, %v800
        %v802 = vrot.slane %v747, %v801
        %v803 = vlaneseq
        %v804 = vshrl.u32 %v803, 7
        %v805 = vsub.s32 1, %v804
        %v806 = vrot.slane %v748, %v805
        %v807 = vmul.f32 %v797, %v802
        %v808 = vmul.f32 %v795, %v806
        %v809 = vmul.f32 %v798, %v802
        %v810 = vmul.f32 %v796, %v806
        %v811 = vpack.c.bf16 %v809, %v807
        %v812 = vpack.c.bf16 %v810, %v808
        %813 = vst [vmem:[#allocation2 + $0x10] sm:$0xff] %v811
        %814 = vst [vmem:[#allocation2 + $0x18] sm:$0xff] %v812
        %815 = vrot.lane.b32.xlu0 %v743, 15
        %v816 = vpop.permute.xlu0 %815
        %817 = vrot.lane.b32.xlu0 %v745, 15
        %v818 = vpop.permute.xlu0 %817
        %819 = vrot.lane.b32.xlu0 %v744, 15
        %v820 = vpop.permute.xlu0 %819
        %821 = vrot.lane.b32.xlu0 %v746, 15
        %v822 = vpop.permute.xlu0 %821
        %vm823 = vcmp.lt.s32.totalorder %v764, 15
        %v824 = vsel %vm823, %v816, %v820
        %v825 = vsel %vm823, %v818, %v822
        %v826 = vsel %vm823, %v820, %v816
        %v827 = vsel %vm823, %v822, %v818
        %v828 = vlaneseq
        %v829 = vshrl.u32 %v828, 7
        %v830 = vsub.s32 2, %v829
        %v831 = vrot.slane %v747, %v830
        %v832 = vlaneseq
        %v833 = vshrl.u32 %v832, 7
        %v834 = vsub.s32 2, %v833
        %v835 = vrot.slane %v748, %v834
        %v836 = vmul.f32 %v826, %v831
        %v837 = vmul.f32 %v824, %v835
        %v838 = vmul.f32 %v827, %v831
        %v839 = vmul.f32 %v825, %v835
        %v840 = vpack.c.bf16 %v838, %v836
        %v841 = vpack.c.bf16 %v839, %v837
        %842 = vst [vmem:[#allocation2 + $0x20] sm:$0xff] %v840
        %843 = vst [vmem:[#allocation2 + $0x28] sm:$0xff] %v841
        %844 = vrot.lane.b32.xlu0 %v743, 1
        %v845 = vpop.permute.xlu0 %844
        %846 = vrot.lane.b32.xlu0 %v745, 1
        %v847 = vpop.permute.xlu0 %846
        %848 = vrot.lane.b32.xlu0 %v744, 1
        %v849 = vpop.permute.xlu0 %848
        %850 = vrot.lane.b32.xlu0 %v746, 1
        %v851 = vpop.permute.xlu0 %850
        %vm852 = vcmp.lt.s32.totalorder %v764, 1
        %v853 = vsel %vm852, %v845, %v849
        %v854 = vsel %vm852, %v847, %v851
        %v855 = vsel %vm852, %v849, %v845
        %v856 = vsel %vm852, %v851, %v847
        %v857 = vlaneseq
        %v858 = vshrl.u32 %v857, 7
        %v859 = vsub.s32 3, %v858
        %v860 = vrot.slane %v747, %v859
        %v861 = vlaneseq
        %v862 = vshrl.u32 %v861, 7
        %v863 = vsub.s32 3, %v862
        %v864 = vrot.slane %v748, %v863
        %v865 = vmul.f32 %v855, %v860
        %v866 = vmul.f32 %v853, %v864
        %v867 = vmul.f32 %v856, %v860
        %v868 = vmul.f32 %v854, %v864
        %v869 = vpack.c.bf16 %v867, %v865
        %v870 = vpack.c.bf16 %v868, %v866
        %871 = vst [vmem:[#allocation2 + $0x30] sm:$0xff] %v869
        %872 = vst [vmem:[#allocation2 + $0x38] sm:$0xff] %v870
        %873 = vrot.lane.b32.xlu0 %v743, 127
        %v874 = vpop.permute.xlu0 %873
        %875 = vrot.lane.b32.xlu0 %v745, 127
        %v876 = vpop.permute.xlu0 %875
        %877 = vrot.lane.b32.xlu0 %v744, 127
        %v878 = vpop.permute.xlu0 %877
        %879 = vrot.lane.b32.xlu0 %v746, 127
        %v880 = vpop.permute.xlu0 %879
        %vm881 = vcmp.lt.s32.totalorder %v764, 127
        %v882 = vsel %vm881, %v874, %v878
        %v883 = vsel %vm881, %v876, %v880
        %v884 = vsel %vm881, %v878, %v874
        %v885 = vsel %vm881, %v880, %v876
        %v886 = vlaneseq
        %v887 = vshrl.u32 %v886, 7
        %v888 = vsub.s32 5, %v887
        %v889 = vrot.slane %v747, %v888
        %v890 = vlaneseq
        %v891 = vshrl.u32 %v890, 7
        %v892 = vsub.s32 5, %v891
        %v893 = vrot.slane %v748, %v892
        %v894 = vmul.f32 %v882, %v889
        %v895 = vmul.f32 %v884, %v893
        %v896 = vmul.f32 %v883, %v889
        %v897 = vmul.f32 %v885, %v893
        %v898 = vpack.c.bf16 %v896, %v894
        %v899 = vpack.c.bf16 %v897, %v895
        %900 = vst [vmem:[#allocation2 + $0x50] sm:$0xff] %v898
        %901 = vst [vmem:[#allocation2 + $0x58] sm:$0xff] %v899
        %902 = vrot.lane.b32.xlu0 %v743, 113
        %v903 = vpop.permute.xlu0 %902
        %904 = vrot.lane.b32.xlu0 %v745, 113
        %v905 = vpop.permute.xlu0 %904
        %906 = vrot.lane.b32.xlu0 %v744, 113
        %v907 = vpop.permute.xlu0 %906
        %908 = vrot.lane.b32.xlu0 %v746, 113
        %v909 = vpop.permute.xlu0 %908
        %vm910 = vcmp.lt.s32.totalorder %v764, 113
        %v911 = vsel %vm910, %v903, %v907
        %v912 = vsel %vm910, %v905, %v909
        %v913 = vsel %vm910, %v907, %v903
        %v914 = vsel %vm910, %v909, %v905
        %v915 = vlaneseq
        %v916 = vshrl.u32 %v915, 7
        %v917 = vsub.s32 6, %v916
        %v918 = vrot.slane %v747, %v917
        %v919 = vlaneseq
        %v920 = vshrl.u32 %v919, 7
        %v921 = vsub.s32 6, %v920
        %v922 = vrot.slane %v748, %v921
        %v923 = vmul.f32 %v911, %v918
        %v924 = vmul.f32 %v913, %v922
        %v925 = vmul.f32 %v912, %v918
        %v926 = vmul.f32 %v914, %v922
        %v927 = vpack.c.bf16 %v925, %v923
        %v928 = vpack.c.bf16 %v926, %v924
        %929 = vst [vmem:[#allocation2 + $0x60] sm:$0xff] %v927
        %930 = vst [vmem:[#allocation2 + $0x68] sm:$0xff] %v928
        %931 = vrot.lane.b32.xlu0 %v743, 112
        %v932 = vpop.permute.xlu0 %931
        %933 = vrot.lane.b32.xlu0 %v745, 112
        %v934 = vpop.permute.xlu0 %933
        %935 = vrot.lane.b32.xlu0 %v744, 112
        %v936 = vpop.permute.xlu0 %935
        %937 = vrot.lane.b32.xlu0 %v746, 112
        %v938 = vpop.permute.xlu0 %937
        %vm939 = vcmp.lt.s32.totalorder %v764, 112
        %v940 = vsel %vm939, %v932, %v936
        %v941 = vsel %vm939, %v934, %v938
        %v942 = vsel %vm939, %v936, %v932
        %v943 = vsel %vm939, %v938, %v934
        %v944 = vlaneseq
        %v945 = vshrl.u32 %v944, 7
        %v946 = vsub.s32 7, %v945
        %v947 = vrot.slane %v747, %v946
        %v948 = vlaneseq
        %v949 = vshrl.u32 %v948, 7
        %v950 = vsub.s32 7, %v949
        %v951 = vrot.slane %v748, %v950
        %v952 = vmul.f32 %v940, %v947
        %v953 = vmul.f32 %v942, %v951
        %v954 = vmul.f32 %v941, %v947
        %v955 = vmul.f32 %v943, %v951
        %v956 = vpack.c.bf16 %v954, %v952
        %v957 = vpack.c.bf16 %v955, %v953
        %958 = vst [vmem:[#allocation2 + $0x70] sm:$0xff] %v956
        %959 = vst [vmem:[#allocation2 + $0x78] sm:$0xff] %v957
        %960 = vrot.lane.b32.xlu0 %v743, 111
        %v961 = vpop.permute.xlu0 %960
        %962 = vrot.lane.b32.xlu0 %v745, 111
        %v963 = vpop.permute.xlu0 %962
        %964 = vrot.lane.b32.xlu0 %v744, 111
        %v965 = vpop.permute.xlu0 %964
        %966 = vrot.lane.b32.xlu0 %v746, 111
        %v967 = vpop.permute.xlu0 %966
        %vm968 = vcmp.lt.s32.totalorder %v764, 111
        %v969 = vsel %vm968, %v961, %v965
        %v970 = vsel %vm968, %v963, %v967
        %v971 = vsel %vm968, %v965, %v961
        %v972 = vsel %vm968, %v967, %v963
        %v973 = vlaneseq
        %v974 = vshrl.u32 %v973, 7
        %v975 = vsub.s32 0, %v974
        %v976 = vrot.slane %v749, %v975
        %v977 = vlaneseq
        %v978 = vshrl.u32 %v977, 7
        %v979 = vsub.s32 0, %v978
        %v980 = vrot.slane %v750, %v979
        %v981 = vmul.f32 %v969, %v976
        %v982 = vmul.f32 %v971, %v980
        %v983 = vmul.f32 %v970, %v976
        %v984 = vmul.f32 %v972, %v980
        %v985 = vpack.c.bf16 %v983, %v981
        %v986 = vpack.c.bf16 %v984, %v982
        %987 = vst [vmem:[#allocation2 + $0x80] sm:$0xff] %v985
        %988 = vst [vmem:[#allocation2 + $0x88] sm:$0xff] %v986
        %v989 = vld [vmem:[%s3] sm:$0xff]
        %v990 = vld [vmem:[%s3 + $0x8] sm:$0xff]
        %v991 = vld [vmem:[#allocation2] sm:$0xff]
        %v992 = vld [vmem:[#allocation2 + $0x8] sm:$0xff]
        %v993 = vld [vmem:[#allocation2 + $0x10] sm:$0xff]
        %v994 = vld [vmem:[#allocation2 + $0x18] sm:$0xff]
        %v995 = vld [vmem:[#allocation2 + $0x20] sm:$0xff]
        %v996 = vld [vmem:[#allocation2 + $0x28] sm:$0xff]
        %v997 = vld [vmem:[#allocation2 + $0x30] sm:$0xff]
        %v998 = vld [vmem:[#allocation2 + $0x38] sm:$0xff]
        %v999 = vld [vmem:[#allocation2 + $0x40] sm:$0xff]
        %v1000 = vld [vmem:[#allocation2 + $0x48] sm:$0xff]
        %v1001 = vld [vmem:[#allocation2 + $0x50] sm:$0xff]
        %v1002 = vld [vmem:[#allocation2 + $0x58] sm:$0xff]
        %v1003 = vld [vmem:[#allocation2 + $0x60] sm:$0xff]
        %v1004 = vld [vmem:[#allocation2 + $0x68] sm:$0xff]
        %v1005 = vld [vmem:[#allocation2 + $0x70] sm:$0xff]
        %v1006 = vld [vmem:[#allocation2 + $0x78] sm:$0xff]
        %v1007 = vld [vmem:[#allocation2 + $0x80] sm:$0xff]
        %v1008 = vld [vmem:[#allocation2 + $0x88] sm:$0xff]
        %1010 = vset.pattern.permute.xlu0 0
        %1011 = vperm.xlu0 %1010, %v289
        %v1012 = vpop.permute.xlu0 %1011
        %1015 = vset.pattern.permute.xlu0 0
        %1016 = vperm.xlu0 %1015, %v290
        %v1017 = vpop.permute.xlu0 %1016
        %v1021 = vunpack.c.l.b16 %v989
        %v1022 = vunpack.c.h.b16 %v989
        %v1023 = vunpack.c.l.b16 %v990
        %v1024 = vunpack.c.h.b16 %v990
        %v1025 = vpack.c.b16 %v1023, %v1021
        %v1026 = vpack.c.b16 %v1024, %v1022
        %v1029 = vsel %vm675, %v1026, 0
        %1031 = vmatprep.subr.bf16.mxu0 %v992
        %1032 = vmatpush1.bf16.msra.mxu0 %v991
        %1033 = vmatprep.subr.bf16.mxu0 %v994
        %1034 = vmatpush1.bf16.msra.mxu0 %v993
        %1035 = vmatprep.subr.bf16.mxu0 %v996
        %1036 = vmatpush1.bf16.msra.mxu0 %v995
        %1037 = vmatprep.subr.bf16.mxu0 %v998
        %1038 = vmatpush1.bf16.msra.mxu0 %v997
        %1039 = vmatprep.subr.bf16.mxu0 %v1000
        %1040 = vmatpush1.bf16.msra.mxu0 %v999
        %1041 = vmatprep.subr.bf16.mxu0 %v1002
        %1042 = vmatpush1.bf16.msra.mxu0 %v1001
        %1043 = vmatprep.subr.bf16.mxu0 %v1004
        %1044 = vmatpush1.bf16.msra.mxu0 %v1003
        %1045 = vmatprep.subr.bf16.mxu0 %v1006
        %1046 = vmatpush1.bf16.msra.mxu0 %v1005
        %1047 = vmatprep.subr.bf16.mxu0 %v1008
        %1048 = vmatpush1.bf16.msra.mxu0 %v1007
        %1049 = vmatprep.subr.bf16.mxu0 0
        %1050 = vmatpush1.bf16.msra.mxu0 0
        %1051 = vmatprep.subr.bf16.mxu0 0
        %1052 = vmatpush1.bf16.msra.mxu0 0
        %1053 = vmatprep.subr.bf16.mxu0 0
        %1054 = vmatpush1.bf16.msra.mxu0 0
        %1055 = vmatprep.subr.bf16.mxu0 0
        %1056 = vmatpush1.bf16.msra.mxu0 0
        %1057 = vmatprep.subr.bf16.mxu0 0
        %1058 = vmatpush1.bf16.msra.mxu0 0
        %1059 = vmatprep.subr.bf16.mxu0 0
        %1060 = vmatpush1.bf16.msra.mxu0 0
        %1061 = vmatprep.subr.bf16.mxu0 0
        %1062 = vmatpush1.bf16.msra.mxu0 0
        %1063 = vmatprep.mubr.bf16.mxu0 %v1029
        %1064 = vmatmul.mubr.bf16.gmra.mrb[0].mxu0 %v1025
        %v1065 = vpop.f32.mrb[0].mxu0
        %v1066 = vadd.f32 %v1012, %v1065
        %v1067 = vpop.f32.mrb[0].mxu0
        %v1068 = vadd.f32 %v1012, %v1067
        %v1069 = vpop.f32.mrb[0].mxu0
        %v1070 = vadd.f32 %v1017, %v1069
        %v1071 = vpop.f32.mrb[0].mxu0
        %v1072 = vadd.f32 %v1017, %v1071
        %1073 = vdwg.mxu0
        %v1074 = vmul.f32 %v1066, 0.2
        %v1075 = vmul.f32 %v1068, 0.2
        %v1076 = vmul.f32 %v1070, 0.2
        %v1077 = vmul.f32 %v1072, 0.2
        %v1078 = vmax.f32 %v1066, %v1074
        %v1079 = vmax.f32 %v1068, %v1075
        %v1080 = vmax.f32 %v1070, %v1076
        %v1081 = vmax.f32 %v1072, %v1077
        %v1082 = vld [vmem:[%s4] sm:$0xf]
        %v1083 = vpack.c.bf16 %v1080, %v1078
        %v1084 = vpack.c.bf16 %v1081, %v1079
        %1086 = vset.pattern.permute.xlu0 0
        %1087 = vperm.xlu0 %1086, %v291
        %v1088 = vpop.permute.xlu0 %1087
        %v1091 = vsel %vm675, %v1082, 0
        %1093 = vmatprep.subr.bf16.mxu0 %v1084
        %1094 = vmatpush1.bf16.msra.mxu0 %v1083
        %1095 = vmatprep.subr.bf16.mxu0 0
        %1096 = vmatpush1.bf16.msra.mxu0 0
        %1097 = vmatprep.subr.bf16.mxu0 0
        %1098 = vmatpush1.bf16.msra.mxu0 0
        %1099 = vmatprep.subr.bf16.mxu0 0
        %1100 = vmatpush1.bf16.msra.mxu0 0
        %1101 = vmatprep.subr.bf16.mxu0 0
        %1102 = vmatpush1.bf16.msra.mxu0 0
        %1103 = vmatprep.subr.bf16.mxu0 0
        %1104 = vmatpush1.bf16.msra.mxu0 0
        %1105 = vmatprep.subr.bf16.mxu0 0
        %1106 = vmatpush1.bf16.msra.mxu0 0
        %1107 = vmatprep.subr.bf16.mxu0 0
        %1108 = vmatpush1.bf16.msra.mxu0 0
        %1109 = vmatprep.subr.bf16.mxu0 0
        %1110 = vmatpush1.bf16.msra.mxu0 0
        %1111 = vmatprep.subr.bf16.mxu0 0
        %1112 = vmatpush1.bf16.msra.mxu0 0
        %1113 = vmatprep.subr.bf16.mxu0 0
        %1114 = vmatpush1.bf16.msra.mxu0 0
        %1115 = vmatprep.subr.bf16.mxu0 0
        %1116 = vmatpush1.bf16.msra.mxu0 0
        %1117 = vmatprep.subr.bf16.mxu0 0
        %1118 = vmatpush1.bf16.msra.mxu0 0
        %1119 = vmatprep.subr.bf16.mxu0 0
        %1120 = vmatpush1.bf16.msra.mxu0 0
        %1121 = vmatprep.subr.bf16.mxu0 0
        %1122 = vmatpush1.bf16.msra.mxu0 0
        %1123 = vmatprep.subr.bf16.mxu0 0
        %1124 = vmatpush1.bf16.msra.mxu0 0
        %1125 = vmatprep.mubr.bf16.mxu0 0
        %1126 = vmatmul.mubr.bf16.gmra.mrb[0].mxu0 %v1091
        %v1127 = vpop.f32.mrb[0].mxu0
        %v1128 = vadd.f32 %v1088, %v1127
        %v1129 = vpop.f32.mrb[0].mxu0
        %v1130 = vadd.f32 %v1088, %v1129
        %v1131 = vpop.f32.mrb[0].mxu0
        %v1132 = vpop.f32.mrb[0].mxu0
        %1133 = vdwg.mxu0
        %v1134 = vadd.f32 %v1128, %v278
        %v1135 = vadd.f32 %v1130, %v279
        %1136 = vst [vmem:[%s271] sm:$0xff] %v1134
        %1137 = vst [vmem:[%s271 + $0x8] sm:$0xff] %v1135
        %s1138 = sand.u32 %s181, 1
        %s1139 = scalar_lea.sflag [#allocation4], %s1138
        %s1140 = sand.u32 %s181, 1
        %s1141 = smul.addr %s1140, 16
        %s1142 = scalar_lea.vmem [#allocation3], %s1141
        // Predicated region
        $region49: #{tpu_custom_call.1} parent=47 // pred_check
          %p1143 = pneg %p191
        $region50: #{tpu_custom_call.1} parent=47 // pred_check_branch
          %1145 = sbr.rel (%p1143) target = $region52
        $region51: #{tpu_custom_call.1} parent=47 // pred_region
          %s1147 = ssub.s32 256, 256
          %1148 = vsyncadd %s1139, %s1147
          %s1149 = smul.addr %s21, 2
          %s1150 = smul.addr %s1149, 128
          %s1151 = scalar_lea.hbm %s7, %s1150
          %s1153 = sshll.u32 %s1142, 4
          %s1154 = int_to_ptr.vmem [resolvable:$true] %s1153
          %1156 = dma.vmem_to_hbm [thread:$0]  %s1154, 256, %s1151, %s1139
        $region52: #{tpu_custom_call.1} parent=47 // pred_fallthru
          _
      $region48: #{tpu_custom_call.1} parent=5 // pred_fallthru
        _
      %p1157 = scmp.le.s32.totalorder 2, %s16
      // Predicated region
      $region53: #{tpu_custom_call.1} parent=5 // pred_check
        %p1158 = pneg %p1157
      $region54: #{tpu_custom_call.1} parent=5 // pred_check_branch
        %1160 = sbr.rel (%p1158) target = $region56
      $region55: #{tpu_custom_call.1} parent=5 // pred_region
        %s1161 = ssub.s32 %s16, 2
        // Predicated region
        $region57: #{tpu_custom_call.1} parent=55 // pred_check
          %p1162 = pneg %p197
        $region58: #{tpu_custom_call.1} parent=55 // pred_check_branch
          %1164 = sbr.rel (%p1162) target = $region60
        $region59: #{tpu_custom_call.1} parent=55 // pred_region
          %s1165 = sand.u32 %s182, 1
          %s1166 = scalar_lea.sflag [#allocation4], %s1165
          %s1167 = sand.u32 %s182, 1
          %s1168 = smul.addr %s1167, 16
          %s1169 = scalar_lea.vmem [#allocation3], %s1168
          %1170 = dma.done %s1166, 256
        $region60: #{tpu_custom_call.1} parent=55 // pred_fallthru
          _
      $region56: #{tpu_custom_call.1} parent=5 // pred_fallthru
        _
    $region6: #{tpu_custom_call.1} parent=1 // loop_footer
      %s20 = sadd.s32 1, %s16
    $region7: #{tpu_custom_call.1} parent=1 // loop_footer_branch
      %15 = sbr.rel target = $region3
    $region8: #{tpu_custom_call.1} parent=1 // loop_exit
      _
    %1171 = vsyncpa [#allocation4], 1
    %s1172 = scalar_lea.sflag [#allocation4], 1
    %1173 = vsyncpa %s1172, 1

</llo_original>
